<compile_context>
chip_gen: v7x
topology: tpu7x:2x2x1
jax: 0.10.0
libtpu: 0.0.40
codegen_flags: <defaults>
</compile_context>

<pallas_src>
import functools
import math

import jax
import jax.numpy as jnp
from jax.experimental import pallas as pl
from jax.experimental.pallas import tpu as pltpu

_LANE = 128              # halo source width / scratch lane alignment
_MXU_MIN_CHANNELS = 32   # below this, the conv runs on the VPU instead of the MXU


def _conv_geometry(kernel_size, dilations):
    # PyTorch padding='same': left = total // 2, extra pad goes on the right.
    lefts = [(d * (kernel_size - 1)) // 2 for d in dilations]
    rights = [d * (kernel_size - 1) - l for d, l in zip(dilations, lefts)]
    return lefts, rights


def _amp_block_kernel(alpha_ref, w_ref, xc_ref, xl_ref, xr_ref, o_ref, buf_ref,
                      *, kernel_size, dilations, use_mxu):
    """One (batch, time-tile) grid step.

    alpha_ref: (C, 1)                        snake alpha (broadcast over time)
    w_ref:     (n_dil*K, C_out, C_in) VMEM   bf16 (MXU path) / f32 (VPU path)
    xc_ref:    (C, T_BLK)                    current time tile of x
    xl_ref:    (C, 128)                      128 columns ending at this tile
    xr_ref:    (C, 128)                      128 columns starting after this tile
    o_ref:     (C, T_BLK)                    output tile
    buf_ref:   (C, 128 + T_BLK + 128) VMEM   lane-aligned padded working buffer
    """
    K = kernel_size
    C, TB = xc_ref.shape
    n_d = len(dilations)
    t = pl.program_id(1)
    n_t = pl.num_programs(1)

    lefts, rights = _conv_geometry(K, dilations)
    HL, HR = sum(lefts), sum(rights)
    # Halo still needed *after* conv stage i (i in [0, n_d]).
    rem_l = [sum(lefts[i:]) for i in range(n_d + 1)]
    rem_r = [sum(rights[i:]) for i in range(n_d + 1)]
    LBASE = _LANE                     # lane-aligned start of the tile's samples
    RBASE = LBASE + TB                # lane-aligned end (exclusive)

    alpha = alpha_ref[...].astype(jnp.float32)        # (C, 1)
    inv_alpha = 1.0 / (alpha + 1e-9)

    def snake(v):
        return v + inv_alpha * jnp.square(jnp.sin(alpha * v))

    # ---- stage snake(x) (+ neighbour halos) into the padded scratch -------
    buf_ref[:, LBASE:RBASE] = snake(xc_ref[...].astype(jnp.float32))
    if HL > 0:
        xl = snake(xl_ref[:, _LANE - HL:].astype(jnp.float32))       # (C, HL)
        buf_ref[:, LBASE - HL:LBASE] = jnp.where(t > 0, xl, 0.0)     # zero pad at t==0
    if HR > 0:
        xr = snake(xr_ref[:, :HR].astype(jnp.float32))               # (C, HR)
        buf_ref[:, RBASE:RBASE + HR] = jnp.where(t < n_t - 1, xr, 0.0)

    # ---- chained dilated convs + residual on a shrinking halo window -------
    def conv_stage(i, d):
        left = lefts[i]
        lo = LBASE - rem_l[i + 1]          # static ints: valid window of stage i
        hi = RBASE + rem_r[i + 1]
        W = hi - lo
        cv = None
        for k in range(K):
            off = lo - left + k * d        # static python int
            if use_mxu:
                # One (C_out, C_in) x (C_in, W) dot per tap, accumulated in f32
                # (no im2col temp); bf16 operands, f32 MXU accumulation.
                tap = buf_ref[:, off:off + W].astype(jnp.bfloat16)
                term = jnp.dot(w_ref[i * K + k], tap,
                               preferred_element_type=jnp.float32)   # (C, W)
            else:
                # Tiny-C VPU path: (C_out,1) x (1,W) broadcast multiply-adds,
                # all f32; full C_out sublane occupancy per VALU op.
                wk = w_ref[i * K + k]                                 # (C_out, C_in)
                term = None
                for ci in range(C):
                    p = wk[:, ci:ci + 1] * buf_ref[ci:ci + 1, off:off + W]
                    term = p if term is None else term + p            # (C, W)
            cv = term if cv is None else cv + term
        return lo, hi, cv

    for i in range(n_d - 1):
        lo, hi, cv = conv_stage(i, dilations[i])
        buf_ref[:, lo:hi] = buf_ref[:, lo:hi] + cv                    # conv + residual

        # Re-impose the global 'same' zero padding at the sequence ends: the
        # out-of-sequence halo columns of the first/last tile must read as
        # zero for the next conv in the chain.
        if HL > 0:
            @pl.when(t == 0)
            def _zero_left():
                buf_ref[:, LBASE - HL:LBASE] = jnp.zeros((C, HL), jnp.float32)
        if HR > 0:
            @pl.when(t == n_t - 1)
            def _zero_right():
                buf_ref[:, RBASE:RBASE + HR] = jnp.zeros((C, HR), jnp.float32)

    # Final stage: its valid window is exactly the output tile, so fuse the
    # conv + residual directly into the (lane-aligned) output store -- no
    # (C, T_BLK) writeback to buf and no re-read.
    lo, hi, cv = conv_stage(n_d - 1, dilations[-1])
    o_ref[...] = (buf_ref[:, LBASE:RBASE] + cv).astype(o_ref.dtype)


def _pick_t_block(B, C, T, use_mxu):
    """Pick the largest 128-aligned time tile dividing T that fits VMEM."""
    # Tiny channel counts: whole-sequence tiles (no halo exchange, one grid
    # step per batch element) -- at small C even long T is only ~MiBs of f32.
    if not use_mxu and T % _LANE == 0 and C * (T + 2 * _LANE) * 4 <= (8 << 20):
        return T
    try:
        vmem_cap = int(getattr(pltpu.get_tpu_info(), "vmem_capacity_bytes",
                               64 << 20))
    except Exception:  # interpret mode / API drift: assume smallest (v7x)
        vmem_cap = 64 << 20
    budget = vmem_cap // 4        # headroom for double-buffering + compiler temps
    for cand in (4096, 2048, 1024, 512, 384, 256, 128):
        if T % cand != 0:
            continue
        if B == 1 and cand > _LANE and T // cand < 2:
            continue              # keep >=2 grid programs so v7x uses both TCs
        # per-step footprint: double-buffered x + out blocks + padded scratch
        step = 4 * C * cand * 4 + C * (cand + 2 * _LANE) * 4
        if step <= budget:
            return cand
    return None


def amp_block(x, alpha, weights, *, kernel_size, dilations, t_block=None):
    """AmpBlock forward.

    x: (B, C, T) float32; alpha: (C, 1); weights: (n_dil, C_out, C_in, K).
    """
    B, C, T = x.shape
    n_d = len(dilations)
    K = kernel_size
    assert n_d >= 1
    assert weights.shape == (n_d, C, C, K), weights.shape

    lefts, rights = _conv_geometry(K, dilations)
    HL, HR = sum(lefts), sum(rights)
    if max(HL, HR) > _LANE:
        raise ValueError("total conv halo exceeds one 128-column neighbour block")

    use_mxu = C >= _MXU_MIN_CHANNELS

    if t_block is None:
        t_block = _pick_t_block(B, C, T, use_mxu)
    if (t_block is None or t_block < _LANE or t_block % _LANE != 0
            or T % t_block != 0):
        # TODO(synk): support ragged T via an in-kernel end-of-sequence mask.
        raise ValueError(f"T={T} must be divisible by a 128-aligned t_block "
                         f"(got t_block={t_block})")

    n_t = T // t_block
    blk128 = t_block // _LANE
    n128 = T // _LANE
    WB = _LANE + t_block + _LANE        # lane-aligned scratch (LBASE = 128)

    # Weight layout shared by both paths: (n_dil*K, C_out, C_in);
    # w_prep[i*K + k] = weights[i, :, :, k].  bf16 for MXU, f32 for tiny-C VPU.
    w_prep = jnp.transpose(weights, (0, 3, 1, 2)).reshape(n_d * K, C, C)
    w_prep = w_prep.astype(jnp.bfloat16 if use_mxu else jnp.float32)
    w_spec = pl.BlockSpec((n_d * K, C, C), lambda b, t: (0, 0, 0))
    w_bytes = int(w_prep.size) * w_prep.dtype.itemsize

    # Explicit VMEM budget from the actual per-step footprint (double-buffered
    # in/out blocks + halos + scratch + weights), capped so it fits v7x.
    est = (2 * C * t_block * 4            # x centre blocks (double-buffered)
           + 2 * 2 * C * _LANE * 4        # x halo blocks (left + right)
           + 2 * C * t_block * 4          # output blocks
           + 2 * C * 4                    # alpha
           + C * WB * 4                   # padded working buffer
           + 2 * w_bytes)                 # weights
    vmem_limit = int(min(max(est + (8 << 20), 16 << 20), 48 << 20))

    kernel = functools.partial(
        _amp_block_kernel,
        kernel_size=K,
        dilations=tuple(dilations),
        use_mxu=use_mxu,
    )

    return pl.pallas_call(
        kernel,
        out_shape=jax.ShapeDtypeStruct((B, C, T), x.dtype),
        grid=(B, n_t),
        in_specs=[
            pl.BlockSpec((C, 1), lambda b, t: (0, 0)),                 # alpha
            w_spec,                                                    # weights
            pl.BlockSpec((None, C, t_block), lambda b, t: (b, 0, t)),  # x (centre)
            pl.BlockSpec((None, C, _LANE),                             # x (left halo)
                         lambda b, t: (b, 0, jnp.maximum(t * blk128 - 1, 0))),
            pl.BlockSpec((None, C, _LANE),                             # x (right halo)
                         lambda b, t: (b, 0, jnp.minimum((t + 1) * blk128,
                                                         n128 - 1))),
        ],
        out_specs=pl.BlockSpec((None, C, t_block), lambda b, t: (b, 0, t)),
        scratch_shapes=[pltpu.VMEM((C, WB), jnp.float32)],
        compiler_params=pltpu.CompilerParams(
            dimension_semantics=("parallel", "parallel"),
            vmem_limit_bytes=vmem_limit),
    )(alpha, w_prep, x, x, x)


def amp_block_ref(x, alpha, weights, *, kernel_size, dilations):
    """Pure-JAX f32 reference (mirrors the PyTorch forward)."""
    a = alpha[None]  # (1, C, 1)
    y = x + (1.0 / (a + 1e-9)) * jnp.square(jnp.sin(a * x))
    for w, d in zip(weights, dilations):
        conv = jax.lax.conv_general_dilated(
            y, w, window_strides=(1,), padding="SAME",
            rhs_dilation=(d,), dimension_numbers=("NCH", "OIH", "NCH"),
            precision=jax.lax.Precision.HIGHEST)
        y = conv + y
    return y


def _run_case(*, B, C, T, kernel_size, dilations, t_block, atol, rtol):
    key = jax.random.PRNGKey(0)
    kx, kw, ka = jax.random.split(key, 3)

    x = jax.random.normal(kx, (B, C, T), dtype=jnp.float32)
    # PyTorch Conv1d default init scale: U(-b, b), b = 1/sqrt(C_in * K).
    bound = 1.0 / math.sqrt(C * kernel_size)
    weights = jax.random.uniform(
        kw, (len(dilations), C, C, kernel_size), dtype=jnp.float32,
        minval=-bound, maxval=bound)
    alpha = jax.random.uniform(ka, (C, 1), dtype=jnp.float32,
                               minval=0.5, maxval=1.5)

    out = amp_block(x, alpha, weights, kernel_size=kernel_size,
                    dilations=dilations, t_block=t_block)
    out = jax.block_until_ready(out)
    ref = amp_block_ref(x, alpha, weights, kernel_size=kernel_size,
                        dilations=dilations)

    assert out.shape == (B, C, T), out.shape
    assert out.dtype == x.dtype, out.dtype
    max_err = float(jnp.max(jnp.abs(out - ref)))
    assert jnp.allclose(out, ref, atol=atol, rtol=rtol), f"max_err={max_err}"


if __name__ == "__main__":
    # Small-channel config, heuristic tiling (VPU conv path, whole-T tile,
    # all f32 -- no halo exchange, one grid step per batch element).
    _run_case(B=2, C=4, T=384, kernel_size=3, dilations=(1, 3, 5),
              t_block=None, atol=1e-3, rtol=1e-3)
    # Same config forced onto 3 time tiles: exercises an interior halo
    # exchange plus both sequence boundaries on the VPU path.
    _run_case(B=2, C=4, T=384, kernel_size=3, dilations=(1, 3, 5),
              t_block=128, atol=1e-3, rtol=1e-3)
    # Wider-channel config (per-tap MXU dots, bf16 operands / f32 accum);
    # B==1 so the heuristic keeps n_t >= 2 (two tiles, halo exchange).
    _run_case(B=1, C=128, T=256, kernel_size=3, dilations=(1, 3, 5),
              t_block=None, atol=5e-2, rtol=5e-2)
    # Larger time tile via the heuristic (single 1024-wide tile, MXU path).
    _run_case(B=2, C=64, T=1024, kernel_size=3, dilations=(1, 3, 5),
              t_block=None, atol=5e-2, rtol=5e-2)

    print("KERNEL_OK")
</pallas_src>

<mosaic_0001>
module attributes {stable_mosaic.version = 11 : i64} {
  func.func @_amp_block_kernel(%arg0: i32, %arg1: i32, %arg2: memref<4x1xf32, #tpu.memory_space<vmem>>, %arg3: memref<9x4x4xf32, #tpu.memory_space<vmem>>, %arg4: memref<1x4x384xf32, #tpu.memory_space<vmem>>, %arg5: memref<1x4x128xf32, #tpu.memory_space<vmem>>, %arg6: memref<1x4x128xf32, #tpu.memory_space<vmem>>, %arg7: memref<1x4x384xf32, #tpu.memory_space<vmem>>, %arg8: memref<4x640xf32, #tpu.memory_space<vmem>>) attributes {dimension_semantics = [#tpu.dimension_semantics<parallel>, #tpu.dimension_semantics<parallel>], iteration_bounds = array<i64: 2, 1>, scalar_prefetch = 0 : i64, scratch_operands = 1 : i64, tpu.core_type = #tpu.core_type<tc>, window_params = [{pipeline_mode = #tpu.pipeline_mode<synchronous>, transform_indices = @transform_0, window_bounds = array<i64: 4, 1>}, {pipeline_mode = #tpu.pipeline_mode<synchronous>, transform_indices = @transform_1, window_bounds = array<i64: 9, 4, 4>}, {transform_indices = @transform_2, window_bounds = array<i64: 1, 4, 384>}, {transform_indices = @transform_3, window_bounds = array<i64: 1, 4, 128>}, {transform_indices = @transform_4, window_bounds = array<i64: 1, 4, 128>}, {transform_indices = @transform_5, window_bounds = array<i64: 1, 4, 384>}]} {
    %c0 = arith.constant 0 : index
    %c0_0 = arith.constant 0 : index
    %0 = vector.load %arg2[%c0, %c0_0] : memref<4x1xf32, #tpu.memory_space<vmem>>, vector<4x1xf32>
    %cst = arith.constant 9.99999971E-10 : f32
    %1 = vector.broadcast %cst : f32 to vector<4x1xf32>
    %2 = arith.addf %0, %1 : vector<4x1xf32>
    %cst_1 = arith.constant 1.000000e+00 : f32
    %3 = vector.broadcast %cst_1 : f32 to vector<4x1xf32>
    %4 = arith.divf %3, %2 : vector<4x1xf32>
    %c0_2 = arith.constant 0 : index
    %c0_3 = arith.constant 0 : index
    %c0_4 = arith.constant 0 : index
    %5 = vector.load %arg4[%c0_2, %c0_3, %c0_4] : memref<1x4x384xf32, #tpu.memory_space<vmem>>, vector<1x4x384xf32>
    %6 = vector.shape_cast %5 : vector<1x4x384xf32> to vector<4x384xf32>
    %7 = vector.broadcast %0 : vector<4x1xf32> to vector<4x384xf32>
    %8 = arith.mulf %7, %6 : vector<4x384xf32>
    %9 = math.sin %8 : vector<4x384xf32>
    %10 = arith.mulf %9, %9 : vector<4x384xf32>
    %11 = vector.broadcast %4 : vector<4x1xf32> to vector<4x384xf32>
    %12 = arith.mulf %11, %10 : vector<4x384xf32>
    %13 = arith.addf %6, %12 : vector<4x384xf32>
    %c0_5 = arith.constant 0 : index
    %c128 = arith.constant 128 : index
    %14 = vector.load %arg8[%c0_5, %c128] : memref<4x640xf32, #tpu.memory_space<vmem>>, vector<4x384xf32>
    tpu.vector_store %arg8[%c0_5, %c128], %13 {strides = array<i32>} : memref<4x640xf32, #tpu.memory_space<vmem>>, vector<4x384xf32>,
    %c0_6 = arith.constant 0 : index
    %c0_7 = arith.constant 0 : index
    %c119 = arith.constant 119 : index
    %15 = vector.load %arg5[%c0_6, %c0_7, %c119] : memref<1x4x128xf32, #tpu.memory_space<vmem>>, vector<1x4x9xf32>
    %16 = vector.shape_cast %15 : vector<1x4x9xf32> to vector<4x9xf32>
    %17 = vector.broadcast %0 : vector<4x1xf32> to vector<4x9xf32>
    %18 = arith.mulf %17, %16 : vector<4x9xf32>
    %19 = math.sin %18 : vector<4x9xf32>
    %20 = arith.mulf %19, %19 : vector<4x9xf32>
    %21 = vector.broadcast %4 : vector<4x1xf32> to vector<4x9xf32>
    %22 = arith.mulf %21, %20 : vector<4x9xf32>
    %23 = arith.addf %16, %22 : vector<4x9xf32>
    %c0_i32 = arith.constant 0 : i32
    %24 = arith.cmpi sgt, %arg1, %c0_i32 : i32
    %cst_8 = arith.constant 0.000000e+00 : f32
    %25 = vector.broadcast %cst_8 : f32 to vector<4x9xf32>
    %26 = arith.select %24, %23, %25 : vector<4x9xf32>
    %c0_9 = arith.constant 0 : index
    %c119_10 = arith.constant 119 : index
    %27 = vector.load %arg8[%c0_9, %c119_10] : memref<4x640xf32, #tpu.memory_space<vmem>>, vector<4x9xf32>
    tpu.vector_store %arg8[%c0_9, %c119_10], %26 {strides = array<i32>} : memref<4x640xf32, #tpu.memory_space<vmem>>, vector<4x9xf32>,
    %c0_11 = arith.constant 0 : index
    %c0_12 = arith.constant 0 : index
    %c0_13 = arith.constant 0 : index
    %28 = vector.load %arg6[%c0_11, %c0_12, %c0_13] : memref<1x4x128xf32, #tpu.memory_space<vmem>>, vector<1x4x9xf32>
    %29 = vector.shape_cast %28 : vector<1x4x9xf32> to vector<4x9xf32>
    %30 = vector.broadcast %0 : vector<4x1xf32> to vector<4x9xf32>
    %31 = arith.mulf %30, %29 : vector<4x9xf32>
    %32 = math.sin %31 : vector<4x9xf32>
    %33 = arith.mulf %32, %32 : vector<4x9xf32>
    %34 = vector.broadcast %4 : vector<4x1xf32> to vector<4x9xf32>
    %35 = arith.mulf %34, %33 : vector<4x9xf32>
    %36 = arith.addf %29, %35 : vector<4x9xf32>
    %c0_i32_14 = arith.constant 0 : i32
    %37 = arith.cmpi slt, %arg1, %c0_i32_14 : i32
    %cst_15 = arith.constant 0.000000e+00 : f32
    %38 = vector.broadcast %cst_15 : f32 to vector<4x9xf32>
    %39 = arith.select %37, %36, %38 : vector<4x9xf32>
    %c0_16 = arith.constant 0 : index
    %c512 = arith.constant 512 : index
    %40 = vector.load %arg8[%c0_16, %c512] : memref<4x640xf32, #tpu.memory_space<vmem>>, vector<4x9xf32>
    tpu.vector_store %arg8[%c0_16, %c512], %39 {strides = array<i32>} : memref<4x640xf32, #tpu.memory_space<vmem>>, vector<4x9xf32>,
    %c0_17 = arith.constant 0 : index
    %c0_18 = arith.constant 0 : index
    %c0_19 = arith.constant 0 : index
    %41 = vector.load %arg3[%c0_17, %c0_18, %c0_19] : memref<9x4x4xf32, #tpu.memory_space<vmem>>, vector<1x4x4xf32>
    %42 = vector.shape_cast %41 : vector<1x4x4xf32> to vector<4x4xf32>
    %43 = vector.extract_strided_slice %42 {offsets = [0, 0], sizes = [4, 1], strides = [1, 1]} : vector<4x4xf32> to vector<4x1xf32>
    %c0_20 = arith.constant 0 : index
    %c119_21 = arith.constant 119 : index
    %44 = vector.load %arg8[%c0_20, %c119_21] : memref<4x640xf32, #tpu.memory_space<vmem>>, vector<1x400xf32>
    %45 = vector.broadcast %43 : vector<4x1xf32> to vector<4x400xf32>
    %46 = vector.broadcast %44 : vector<1x400xf32> to vector<4x400xf32>
    %47 = arith.mulf %45, %46 : vector<4x400xf32>
    %48 = vector.extract_strided_slice %42 {offsets = [0, 1], sizes = [4, 1], strides = [1, 1]} : vector<4x4xf32> to vector<4x1xf32>
    %c1 = arith.constant 1 : index
    %c119_22 = arith.constant 119 : index
    %49 = vector.load %arg8[%c1, %c119_22] : memref<4x640xf32, #tpu.memory_space<vmem>>, vector<1x400xf32>
    %50 = vector.broadcast %48 : vector<4x1xf32> to vector<4x400xf32>
    %51 = vector.broadcast %49 : vector<1x400xf32> to vector<4x400xf32>
    %52 = arith.mulf %50, %51 : vector<4x400xf32>
    %53 = arith.addf %47, %52 : vector<4x400xf32>
    %54 = vector.extract_strided_slice %42 {offsets = [0, 2], sizes = [4, 1], strides = [1, 1]} : vector<4x4xf32> to vector<4x1xf32>
    %c2 = arith.constant 2 : index
    %c119_23 = arith.constant 119 : index
    %55 = vector.load %arg8[%c2, %c119_23] : memref<4x640xf32, #tpu.memory_space<vmem>>, vector<1x400xf32>
    %56 = vector.broadcast %54 : vector<4x1xf32> to vector<4x400xf32>
    %57 = vector.broadcast %55 : vector<1x400xf32> to vector<4x400xf32>
    %58 = arith.mulf %56, %57 : vector<4x400xf32>
    %59 = arith.addf %53, %58 : vector<4x400xf32>
    %60 = vector.extract_strided_slice %42 {offsets = [0, 3], sizes = [4, 1], strides = [1, 1]} : vector<4x4xf32> to vector<4x1xf32>
    %c3 = arith.constant 3 : index
    %c119_24 = arith.constant 119 : index
    %61 = vector.load %arg8[%c3, %c119_24] : memref<4x640xf32, #tpu.memory_space<vmem>>, vector<1x400xf32>
    %62 = vector.broadcast %60 : vector<4x1xf32> to vector<4x400xf32>
    %63 = vector.broadcast %61 : vector<1x400xf32> to vector<4x400xf32>
    %64 = arith.mulf %62, %63 : vector<4x400xf32>
    %65 = arith.addf %59, %64 : vector<4x400xf32>
    %c1_25 = arith.constant 1 : index
    %c0_26 = arith.constant 0 : index
    %c0_27 = arith.constant 0 : index
    %66 = vector.load %arg3[%c1_25, %c0_26, %c0_27] : memref<9x4x4xf32, #tpu.memory_space<vmem>>, vector<1x4x4xf32>
    %67 = vector.shape_cast %66 : vector<1x4x4xf32> to vector<4x4xf32>
    %68 = vector.extract_strided_slice %67 {offsets = [0, 0], sizes = [4, 1], strides = [1, 1]} : vector<4x4xf32> to vector<4x1xf32>
    %c0_28 = arith.constant 0 : index
    %c120 = arith.constant 120 : index
    %69 = vector.load %arg8[%c0_28, %c120] : memref<4x640xf32, #tpu.memory_space<vmem>>, vector<1x400xf32>
    %70 = vector.broadcast %68 : vector<4x1xf32> to vector<4x400xf32>
    %71 = vector.broadcast %69 : vector<1x400xf32> to vector<4x400xf32>
    %72 = arith.mulf %70, %71 : vector<4x400xf32>
    %73 = vector.extract_strided_slice %67 {offsets = [0, 1], sizes = [4, 1], strides = [1, 1]} : vector<4x4xf32> to vector<4x1xf32>
    %c1_29 = arith.constant 1 : index
    %c120_30 = arith.constant 120 : index
    %74 = vector.load %arg8[%c1_29, %c120_30] : memref<4x640xf32, #tpu.memory_space<vmem>>, vector<1x400xf32>
    %75 = vector.broadcast %73 : vector<4x1xf32> to vector<4x400xf32>
    %76 = vector.broadcast %74 : vector<1x400xf32> to vector<4x400xf32>
    %77 = arith.mulf %75, %76 : vector<4x400xf32>
    %78 = arith.addf %72, %77 : vector<4x400xf32>
    %79 = vector.extract_strided_slice %67 {offsets = [0, 2], sizes = [4, 1], strides = [1, 1]} : vector<4x4xf32> to vector<4x1xf32>
    %c2_31 = arith.constant 2 : index
    %c120_32 = arith.constant 120 : index
    %80 = vector.load %arg8[%c2_31, %c120_32] : memref<4x640xf32, #tpu.memory_space<vmem>>, vector<1x400xf32>
    %81 = vector.broadcast %79 : vector<4x1xf32> to vector<4x400xf32>
    %82 = vector.broadcast %80 : vector<1x400xf32> to vector<4x400xf32>
    %83 = arith.mulf %81, %82 : vector<4x400xf32>
    %84 = arith.addf %78, %83 : vector<4x400xf32>
    %85 = vector.extract_strided_slice %67 {offsets = [0, 3], sizes = [4, 1], strides = [1, 1]} : vector<4x4xf32> to vector<4x1xf32>
    %c3_33 = arith.constant 3 : index
    %c120_34 = arith.constant 120 : index
    %86 = vector.load %arg8[%c3_33, %c120_34] : memref<4x640xf32, #tpu.memory_space<vmem>>, vector<1x400xf32>
    %87 = vector.broadcast %85 : vector<4x1xf32> to vector<4x400xf32>
    %88 = vector.broadcast %86 : vector<1x400xf32> to vector<4x400xf32>
    %89 = arith.mulf %87, %88 : vector<4x400xf32>
    %90 = arith.addf %84, %89 : vector<4x400xf32>
    %91 = arith.addf %65, %90 : vector<4x400xf32>
    %c2_35 = arith.constant 2 : index
    %c0_36 = arith.constant 0 : index
    %c0_37 = arith.constant 0 : index
    %92 = vector.load %arg3[%c2_35, %c0_36, %c0_37] : memref<9x4x4xf32, #tpu.memory_space<vmem>>, vector<1x4x4xf32>
    %93 = vector.shape_cast %92 : vector<1x4x4xf32> to vector<4x4xf32>
    %94 = vector.extract_strided_slice %93 {offsets = [0, 0], sizes = [4, 1], strides = [1, 1]} : vector<4x4xf32> to vector<4x1xf32>
    %c0_38 = arith.constant 0 : index
    %c121 = arith.constant 121 : index
    %95 = vector.load %arg8[%c0_38, %c121] : memref<4x640xf32, #tpu.memory_space<vmem>>, vector<1x400xf32>
    %96 = vector.broadcast %94 : vector<4x1xf32> to vector<4x400xf32>
    %97 = vector.broadcast %95 : vector<1x400xf32> to vector<4x400xf32>
    %98 = arith.mulf %96, %97 : vector<4x400xf32>
    %99 = vector.extract_strided_slice %93 {offsets = [0, 1], sizes = [4, 1], strides = [1, 1]} : vector<4x4xf32> to vector<4x1xf32>
    %c1_39 = arith.constant 1 : index
    %c121_40 = arith.constant 121 : index
    %100 = vector.load %arg8[%c1_39, %c121_40] : memref<4x640xf32, #tpu.memory_space<vmem>>, vector<1x400xf32>
    %101 = vector.broadcast %99 : vector<4x1xf32> to vector<4x400xf32>
    %102 = vector.broadcast %100 : vector<1x400xf32> to vector<4x400xf32>
    %103 = arith.mulf %101, %102 : vector<4x400xf32>
    %104 = arith.addf %98, %103 : vector<4x400xf32>
    %105 = vector.extract_strided_slice %93 {offsets = [0, 2], sizes = [4, 1], strides = [1, 1]} : vector<4x4xf32> to vector<4x1xf32>
    %c2_41 = arith.constant 2 : index
    %c121_42 = arith.constant 121 : index
    %106 = vector.load %arg8[%c2_41, %c121_42] : memref<4x640xf32, #tpu.memory_space<vmem>>, vector<1x400xf32>
    %107 = vector.broadcast %105 : vector<4x1xf32> to vector<4x400xf32>
    %108 = vector.broadcast %106 : vector<1x400xf32> to vector<4x400xf32>
    %109 = arith.mulf %107, %108 : vector<4x400xf32>
    %110 = arith.addf %104, %109 : vector<4x400xf32>
    %111 = vector.extract_strided_slice %93 {offsets = [0, 3], sizes = [4, 1], strides = [1, 1]} : vector<4x4xf32> to vector<4x1xf32>
    %c3_43 = arith.constant 3 : index
    %c121_44 = arith.constant 121 : index
    %112 = vector.load %arg8[%c3_43, %c121_44] : memref<4x640xf32, #tpu.memory_space<vmem>>, vector<1x400xf32>
    %113 = vector.broadcast %111 : vector<4x1xf32> to vector<4x400xf32>
    %114 = vector.broadcast %112 : vector<1x400xf32> to vector<4x400xf32>
    %115 = arith.mulf %113, %114 : vector<4x400xf32>
    %116 = arith.addf %110, %115 : vector<4x400xf32>
    %117 = arith.addf %91, %116 : vector<4x400xf32>
    %c0_45 = arith.constant 0 : index
    %c120_46 = arith.constant 120 : index
    %118 = vector.load %arg8[%c0_45, %c120_46] : memref<4x640xf32, #tpu.memory_space<vmem>>, vector<4x400xf32>
    %119 = arith.addf %118, %117 : vector<4x400xf32>
    %c0_47 = arith.constant 0 : index
    %c120_48 = arith.constant 120 : index
    %120 = vector.load %arg8[%c0_47, %c120_48] : memref<4x640xf32, #tpu.memory_space<vmem>>, vector<4x400xf32>
    tpu.vector_store %arg8[%c0_47, %c120_48], %119 {strides = array<i32>} : memref<4x640xf32, #tpu.memory_space<vmem>>, vector<4x400xf32>,
    %c0_i32_49 = arith.constant 0 : i32
    %121 = arith.cmpi eq, %arg1, %c0_i32_49 : i32
    %122 = arith.extui %121 : i1 to i32
    %c0_i32_50 = arith.constant 0 : i32
    %123 = arith.cmpi ne, %122, %c0_i32_50 : i32
    scf.if %123 {
      %cst_124 = arith.constant 0.000000e+00 : f32
      %295 = vector.broadcast %cst_124 : f32 to vector<4x9xf32>
      %c0_125 = arith.constant 0 : index
      %c119_126 = arith.constant 119 : index
      %296 = vector.load %arg8[%c0_125, %c119_126] : memref<4x640xf32, #tpu.memory_space<vmem>>, vector<4x9xf32>
      tpu.vector_store %arg8[%c0_125, %c119_126], %295 {strides = array<i32>} : memref<4x640xf32, #tpu.memory_space<vmem>>, vector<4x9xf32>,
    } else {
    }
    %c0_i32_51 = arith.constant 0 : i32
    %124 = arith.cmpi eq, %arg1, %c0_i32_51 : i32
    %125 = arith.extui %124 : i1 to i32
    %c0_i32_52 = arith.constant 0 : i32
    %126 = arith.cmpi ne, %125, %c0_i32_52 : i32
    scf.if %126 {
      %cst_124 = arith.constant 0.000000e+00 : f32
      %295 = vector.broadcast %cst_124 : f32 to vector<4x9xf32>
      %c0_125 = arith.constant 0 : index
      %c512_126 = arith.constant 512 : index
      %296 = vector.load %arg8[%c0_125, %c512_126] : memref<4x640xf32, #tpu.memory_space<vmem>>, vector<4x9xf32>
      tpu.vector_store %arg8[%c0_125, %c512_126], %295 {strides = array<i32>} : memref<4x640xf32, #tpu.memory_space<vmem>>, vector<4x9xf32>,
    } else {
    }
    %c3_53 = arith.constant 3 : index
    %c0_54 = arith.constant 0 : index
    %c0_55 = arith.constant 0 : index
    %127 = vector.load %arg3[%c3_53, %c0_54, %c0_55] : memref<9x4x4xf32, #tpu.memory_space<vmem>>, vector<1x4x4xf32>
    %128 = vector.shape_cast %127 : vector<1x4x4xf32> to vector<4x4xf32>
    %129 = vector.extract_strided_slice %128 {offsets = [0, 0], sizes = [4, 1], strides = [1, 1]} : vector<4x4xf32> to vector<4x1xf32>
    %c0_56 = arith.constant 0 : index
    %c120_57 = arith.constant 120 : index
    %130 = vector.load %arg8[%c0_56, %c120_57] : memref<4x640xf32, #tpu.memory_space<vmem>>, vector<1x394xf32>
    %131 = vector.broadcast %129 : vector<4x1xf32> to vector<4x394xf32>
    %132 = vector.broadcast %130 : vector<1x394xf32> to vector<4x394xf32>
    %133 = arith.mulf %131, %132 : vector<4x394xf32>
    %134 = vector.extract_strided_slice %128 {offsets = [0, 1], sizes = [4, 1], strides = [1, 1]} : vector<4x4xf32> to vector<4x1xf32>
    %c1_58 = arith.constant 1 : index
    %c120_59 = arith.constant 120 : index
    %135 = vector.load %arg8[%c1_58, %c120_59] : memref<4x640xf32, #tpu.memory_space<vmem>>, vector<1x394xf32>
    %136 = vector.broadcast %134 : vector<4x1xf32> to vector<4x394xf32>
    %137 = vector.broadcast %135 : vector<1x394xf32> to vector<4x394xf32>
    %138 = arith.mulf %136, %137 : vector<4x394xf32>
    %139 = arith.addf %133, %138 : vector<4x394xf32>
    %140 = vector.extract_strided_slice %128 {offsets = [0, 2], sizes = [4, 1], strides = [1, 1]} : vector<4x4xf32> to vector<4x1xf32>
    %c2_60 = arith.constant 2 : index
    %c120_61 = arith.constant 120 : index
    %141 = vector.load %arg8[%c2_60, %c120_61] : memref<4x640xf32, #tpu.memory_space<vmem>>, vector<1x394xf32>
    %142 = vector.broadcast %140 : vector<4x1xf32> to vector<4x394xf32>
    %143 = vector.broadcast %141 : vector<1x394xf32> to vector<4x394xf32>
    %144 = arith.mulf %142, %143 : vector<4x394xf32>
    %145 = arith.addf %139, %144 : vector<4x394xf32>
    %146 = vector.extract_strided_slice %128 {offsets = [0, 3], sizes = [4, 1], strides = [1, 1]} : vector<4x4xf32> to vector<4x1xf32>
    %c3_62 = arith.constant 3 : index
    %c120_63 = arith.constant 120 : index
    %147 = vector.load %arg8[%c3_62, %c120_63] : memref<4x640xf32, #tpu.memory_space<vmem>>, vector<1x394xf32>
    %148 = vector.broadcast %146 : vector<4x1xf32> to vector<4x394xf32>
    %149 = vector.broadcast %147 : vector<1x394xf32> to vector<4x394xf32>
    %150 = arith.mulf %148, %149 : vector<4x394xf32>
    %151 = arith.addf %145, %150 : vector<4x394xf32>
    %c4 = arith.constant 4 : index
    %c0_64 = arith.constant 0 : index
    %c0_65 = arith.constant 0 : index
    %152 = vector.load %arg3[%c4, %c0_64, %c0_65] : memref<9x4x4xf32, #tpu.memory_space<vmem>>, vector<1x4x4xf32>
    %153 = vector.shape_cast %152 : vector<1x4x4xf32> to vector<4x4xf32>
    %154 = vector.extract_strided_slice %153 {offsets = [0, 0], sizes = [4, 1], strides = [1, 1]} : vector<4x4xf32> to vector<4x1xf32>
    %c0_66 = arith.constant 0 : index
    %c123 = arith.constant 123 : index
    %155 = vector.load %arg8[%c0_66, %c123] : memref<4x640xf32, #tpu.memory_space<vmem>>, vector<1x394xf32>
    %156 = vector.broadcast %154 : vector<4x1xf32> to vector<4x394xf32>
    %157 = vector.broadcast %155 : vector<1x394xf32> to vector<4x394xf32>
    %158 = arith.mulf %156, %157 : vector<4x394xf32>
    %159 = vector.extract_strided_slice %153 {offsets = [0, 1], sizes = [4, 1], strides = [1, 1]} : vector<4x4xf32> to vector<4x1xf32>
    %c1_67 = arith.constant 1 : index
    %c123_68 = arith.constant 123 : index
    %160 = vector.load %arg8[%c1_67, %c123_68] : memref<4x640xf32, #tpu.memory_space<vmem>>, vector<1x394xf32>
    %161 = vector.broadcast %159 : vector<4x1xf32> to vector<4x394xf32>
    %162 = vector.broadcast %160 : vector<1x394xf32> to vector<4x394xf32>
    %163 = arith.mulf %161, %162 : vector<4x394xf32>
    %164 = arith.addf %158, %163 : vector<4x394xf32>
    %165 = vector.extract_strided_slice %153 {offsets = [0, 2], sizes = [4, 1], strides = [1, 1]} : vector<4x4xf32> to vector<4x1xf32>
    %c2_69 = arith.constant 2 : index
    %c123_70 = arith.constant 123 : index
    %166 = vector.load %arg8[%c2_69, %c123_70] : memref<4x640xf32, #tpu.memory_space<vmem>>, vector<1x394xf32>
    %167 = vector.broadcast %165 : vector<4x1xf32> to vector<4x394xf32>
    %168 = vector.broadcast %166 : vector<1x394xf32> to vector<4x394xf32>
    %169 = arith.mulf %167, %168 : vector<4x394xf32>
    %170 = arith.addf %164, %169 : vector<4x394xf32>
    %171 = vector.extract_strided_slice %153 {offsets = [0, 3], sizes = [4, 1], strides = [1, 1]} : vector<4x4xf32> to vector<4x1xf32>
    %c3_71 = arith.constant 3 : index
    %c123_72 = arith.constant 123 : index
    %172 = vector.load %arg8[%c3_71, %c123_72] : memref<4x640xf32, #tpu.memory_space<vmem>>, vector<1x394xf32>
    %173 = vector.broadcast %171 : vector<4x1xf32> to vector<4x394xf32>
    %174 = vector.broadcast %172 : vector<1x394xf32> to vector<4x394xf32>
    %175 = arith.mulf %173, %174 : vector<4x394xf32>
    %176 = arith.addf %170, %175 : vector<4x394xf32>
    %177 = arith.addf %151, %176 : vector<4x394xf32>
    %c5 = arith.constant 5 : index
    %c0_73 = arith.constant 0 : index
    %c0_74 = arith.constant 0 : index
    %178 = vector.load %arg3[%c5, %c0_73, %c0_74] : memref<9x4x4xf32, #tpu.memory_space<vmem>>, vector<1x4x4xf32>
    %179 = vector.shape_cast %178 : vector<1x4x4xf32> to vector<4x4xf32>
    %180 = vector.extract_strided_slice %179 {offsets = [0, 0], sizes = [4, 1], strides = [1, 1]} : vector<4x4xf32> to vector<4x1xf32>
    %c0_75 = arith.constant 0 : index
    %c126 = arith.constant 126 : index
    %181 = vector.load %arg8[%c0_75, %c126] : memref<4x640xf32, #tpu.memory_space<vmem>>, vector<1x394xf32>
    %182 = vector.broadcast %180 : vector<4x1xf32> to vector<4x394xf32>
    %183 = vector.broadcast %181 : vector<1x394xf32> to vector<4x394xf32>
    %184 = arith.mulf %182, %183 : vector<4x394xf32>
    %185 = vector.extract_strided_slice %179 {offsets = [0, 1], sizes = [4, 1], strides = [1, 1]} : vector<4x4xf32> to vector<4x1xf32>
    %c1_76 = arith.constant 1 : index
    %c126_77 = arith.constant 126 : index
    %186 = vector.load %arg8[%c1_76, %c126_77] : memref<4x640xf32, #tpu.memory_space<vmem>>, vector<1x394xf32>
    %187 = vector.broadcast %185 : vector<4x1xf32> to vector<4x394xf32>
    %188 = vector.broadcast %186 : vector<1x394xf32> to vector<4x394xf32>
    %189 = arith.mulf %187, %188 : vector<4x394xf32>
    %190 = arith.addf %184, %189 : vector<4x394xf32>
    %191 = vector.extract_strided_slice %179 {offsets = [0, 2], sizes = [4, 1], strides = [1, 1]} : vector<4x4xf32> to vector<4x1xf32>
    %c2_78 = arith.constant 2 : index
    %c126_79 = arith.constant 126 : index
    %192 = vector.load %arg8[%c2_78, %c126_79] : memref<4x640xf32, #tpu.memory_space<vmem>>, vector<1x394xf32>
    %193 = vector.broadcast %191 : vector<4x1xf32> to vector<4x394xf32>
    %194 = vector.broadcast %192 : vector<1x394xf32> to vector<4x394xf32>
    %195 = arith.mulf %193, %194 : vector<4x394xf32>
    %196 = arith.addf %190, %195 : vector<4x394xf32>
    %197 = vector.extract_strided_slice %179 {offsets = [0, 3], sizes = [4, 1], strides = [1, 1]} : vector<4x4xf32> to vector<4x1xf32>
    %c3_80 = arith.constant 3 : index
    %c126_81 = arith.constant 126 : index
    %198 = vector.load %arg8[%c3_80, %c126_81] : memref<4x640xf32, #tpu.memory_space<vmem>>, vector<1x394xf32>
    %199 = vector.broadcast %197 : vector<4x1xf32> to vector<4x394xf32>
    %200 = vector.broadcast %198 : vector<1x394xf32> to vector<4x394xf32>
    %201 = arith.mulf %199, %200 : vector<4x394xf32>
    %202 = arith.addf %196, %201 : vector<4x394xf32>
    %203 = arith.addf %177, %202 : vector<4x394xf32>
    %c0_82 = arith.constant 0 : index
    %c123_83 = arith.constant 123 : index
    %204 = vector.load %arg8[%c0_82, %c123_83] : memref<4x640xf32, #tpu.memory_space<vmem>>, vector<4x394xf32>
    %205 = arith.addf %204, %203 : vector<4x394xf32>
    %c0_84 = arith.constant 0 : index
    %c123_85 = arith.constant 123 : index
    %206 = vector.load %arg8[%c0_84, %c123_85] : memref<4x640xf32, #tpu.memory_space<vmem>>, vector<4x394xf32>
    tpu.vector_store %arg8[%c0_84, %c123_85], %205 {strides = array<i32>} : memref<4x640xf32, #tpu.memory_space<vmem>>, vector<4x394xf32>,
    %c0_i32_86 = arith.constant 0 : i32
    %207 = arith.cmpi eq, %arg1, %c0_i32_86 : i32
    %208 = arith.extui %207 : i1 to i32
    %c0_i32_87 = arith.constant 0 : i32
    %209 = arith.cmpi ne, %208, %c0_i32_87 : i32
    scf.if %209 {
      %cst_124 = arith.constant 0.000000e+00 : f32
      %295 = vector.broadcast %cst_124 : f32 to vector<4x9xf32>
      %c0_125 = arith.constant 0 : index
      %c119_126 = arith.constant 119 : index
      %296 = vector.load %arg8[%c0_125, %c119_126] : memref<4x640xf32, #tpu.memory_space<vmem>>, vector<4x9xf32>
      tpu.vector_store %arg8[%c0_125, %c119_126], %295 {strides = array<i32>} : memref<4x640xf32, #tpu.memory_space<vmem>>, vector<4x9xf32>,
    } else {
    }
    %c0_i32_88 = arith.constant 0 : i32
    %210 = arith.cmpi eq, %arg1, %c0_i32_88 : i32
    %211 = arith.extui %210 : i1 to i32
    %c0_i32_89 = arith.constant 0 : i32
    %212 = arith.cmpi ne, %211, %c0_i32_89 : i32
    scf.if %212 {
      %cst_124 = arith.constant 0.000000e+00 : f32
      %295 = vector.broadcast %cst_124 : f32 to vector<4x9xf32>
      %c0_125 = arith.constant 0 : index
      %c512_126 = arith.constant 512 : index
      %296 = vector.load %arg8[%c0_125, %c512_126] : memref<4x640xf32, #tpu.memory_space<vmem>>, vector<4x9xf32>
      tpu.vector_store %arg8[%c0_125, %c512_126], %295 {strides = array<i32>} : memref<4x640xf32, #tpu.memory_space<vmem>>, vector<4x9xf32>,
    } else {
    }
    %c6 = arith.constant 6 : index
    %c0_90 = arith.constant 0 : index
    %c0_91 = arith.constant 0 : index
    %213 = vector.load %arg3[%c6, %c0_90, %c0_91] : memref<9x4x4xf32, #tpu.memory_space<vmem>>, vector<1x4x4xf32>
    %214 = vector.shape_cast %213 : vector<1x4x4xf32> to vector<4x4xf32>
    %215 = vector.extract_strided_slice %214 {offsets = [0, 0], sizes = [4, 1], strides = [1, 1]} : vector<4x4xf32> to vector<4x1xf32>
    %c0_92 = arith.constant 0 : index
    %c123_93 = arith.constant 123 : index
    %216 = vector.load %arg8[%c0_92, %c123_93] : memref<4x640xf32, #tpu.memory_space<vmem>>, vector<1x384xf32>
    %217 = vector.broadcast %215 : vector<4x1xf32> to vector<4x384xf32>
    %218 = vector.broadcast %216 : vector<1x384xf32> to vector<4x384xf32>
    %219 = arith.mulf %217, %218 : vector<4x384xf32>
    %220 = vector.extract_strided_slice %214 {offsets = [0, 1], sizes = [4, 1], strides = [1, 1]} : vector<4x4xf32> to vector<4x1xf32>
    %c1_94 = arith.constant 1 : index
    %c123_95 = arith.constant 123 : index
    %221 = vector.load %arg8[%c1_94, %c123_95] : memref<4x640xf32, #tpu.memory_space<vmem>>, vector<1x384xf32>
    %222 = vector.broadcast %220 : vector<4x1xf32> to vector<4x384xf32>
    %223 = vector.broadcast %221 : vector<1x384xf32> to vector<4x384xf32>
    %224 = arith.mulf %222, %223 : vector<4x384xf32>
    %225 = arith.addf %219, %224 : vector<4x384xf32>
    %226 = vector.extract_strided_slice %214 {offsets = [0, 2], sizes = [4, 1], strides = [1, 1]} : vector<4x4xf32> to vector<4x1xf32>
    %c2_96 = arith.constant 2 : index
    %c123_97 = arith.constant 123 : index
    %227 = vector.load %arg8[%c2_96, %c123_97] : memref<4x640xf32, #tpu.memory_space<vmem>>, vector<1x384xf32>
    %228 = vector.broadcast %226 : vector<4x1xf32> to vector<4x384xf32>
    %229 = vector.broadcast %227 : vector<1x384xf32> to vector<4x384xf32>
    %230 = arith.mulf %228, %229 : vector<4x384xf32>
    %231 = arith.addf %225, %230 : vector<4x384xf32>
    %232 = vector.extract_strided_slice %214 {offsets = [0, 3], sizes = [4, 1], strides = [1, 1]} : vector<4x4xf32> to vector<4x1xf32>
    %c3_98 = arith.constant 3 : index
    %c123_99 = arith.constant 123 : index
    %233 = vector.load %arg8[%c3_98, %c123_99] : memref<4x640xf32, #tpu.memory_space<vmem>>, vector<1x384xf32>
    %234 = vector.broadcast %232 : vector<4x1xf32> to vector<4x384xf32>
    %235 = vector.broadcast %233 : vector<1x384xf32> to vector<4x384xf32>
    %236 = arith.mulf %234, %235 : vector<4x384xf32>
    %237 = arith.addf %231, %236 : vector<4x384xf32>
    %c7 = arith.constant 7 : index
    %c0_100 = arith.constant 0 : index
    %c0_101 = arith.constant 0 : index
    %238 = vector.load %arg3[%c7, %c0_100, %c0_101] : memref<9x4x4xf32, #tpu.memory_space<vmem>>, vector<1x4x4xf32>
    %239 = vector.shape_cast %238 : vector<1x4x4xf32> to vector<4x4xf32>
    %240 = vector.extract_strided_slice %239 {offsets = [0, 0], sizes = [4, 1], strides = [1, 1]} : vector<4x4xf32> to vector<4x1xf32>
    %c0_102 = arith.constant 0 : index
    %c128_103 = arith.constant 128 : index
    %241 = vector.load %arg8[%c0_102, %c128_103] : memref<4x640xf32, #tpu.memory_space<vmem>>, vector<1x384xf32>
    %242 = vector.broadcast %240 : vector<4x1xf32> to vector<4x384xf32>
    %243 = vector.broadcast %241 : vector<1x384xf32> to vector<4x384xf32>
    %244 = arith.mulf %242, %243 : vector<4x384xf32>
    %245 = vector.extract_strided_slice %239 {offsets = [0, 1], sizes = [4, 1], strides = [1, 1]} : vector<4x4xf32> to vector<4x1xf32>
    %c1_104 = arith.constant 1 : index
    %c128_105 = arith.constant 128 : index
    %246 = vector.load %arg8[%c1_104, %c128_105] : memref<4x640xf32, #tpu.memory_space<vmem>>, vector<1x384xf32>
    %247 = vector.broadcast %245 : vector<4x1xf32> to vector<4x384xf32>
    %248 = vector.broadcast %246 : vector<1x384xf32> to vector<4x384xf32>
    %249 = arith.mulf %247, %248 : vector<4x384xf32>
    %250 = arith.addf %244, %249 : vector<4x384xf32>
    %251 = vector.extract_strided_slice %239 {offsets = [0, 2], sizes = [4, 1], strides = [1, 1]} : vector<4x4xf32> to vector<4x1xf32>
    %c2_106 = arith.constant 2 : index
    %c128_107 = arith.constant 128 : index
    %252 = vector.load %arg8[%c2_106, %c128_107] : memref<4x640xf32, #tpu.memory_space<vmem>>, vector<1x384xf32>
    %253 = vector.broadcast %251 : vector<4x1xf32> to vector<4x384xf32>
    %254 = vector.broadcast %252 : vector<1x384xf32> to vector<4x384xf32>
    %255 = arith.mulf %253, %254 : vector<4x384xf32>
    %256 = arith.addf %250, %255 : vector<4x384xf32>
    %257 = vector.extract_strided_slice %239 {offsets = [0, 3], sizes = [4, 1], strides = [1, 1]} : vector<4x4xf32> to vector<4x1xf32>
    %c3_108 = arith.constant 3 : index
    %c128_109 = arith.constant 128 : index
    %258 = vector.load %arg8[%c3_108, %c128_109] : memref<4x640xf32, #tpu.memory_space<vmem>>, vector<1x384xf32>
    %259 = vector.broadcast %257 : vector<4x1xf32> to vector<4x384xf32>
    %260 = vector.broadcast %258 : vector<1x384xf32> to vector<4x384xf32>
    %261 = arith.mulf %259, %260 : vector<4x384xf32>
    %262 = arith.addf %256, %261 : vector<4x384xf32>
    %263 = arith.addf %237, %262 : vector<4x384xf32>
    %c8 = arith.constant 8 : index
    %c0_110 = arith.constant 0 : index
    %c0_111 = arith.constant 0 : index
    %264 = vector.load %arg3[%c8, %c0_110, %c0_111] : memref<9x4x4xf32, #tpu.memory_space<vmem>>, vector<1x4x4xf32>
    %265 = vector.shape_cast %264 : vector<1x4x4xf32> to vector<4x4xf32>
    %266 = vector.extract_strided_slice %265 {offsets = [0, 0], sizes = [4, 1], strides = [1, 1]} : vector<4x4xf32> to vector<4x1xf32>
    %c0_112 = arith.constant 0 : index
    %c133 = arith.constant 133 : index
    %267 = vector.load %arg8[%c0_112, %c133] : memref<4x640xf32, #tpu.memory_space<vmem>>, vector<1x384xf32>
    %268 = vector.broadcast %266 : vector<4x1xf32> to vector<4x384xf32>
    %269 = vector.broadcast %267 : vector<1x384xf32> to vector<4x384xf32>
    %270 = arith.mulf %268, %269 : vector<4x384xf32>
    %271 = vector.extract_strided_slice %265 {offsets = [0, 1], sizes = [4, 1], strides = [1, 1]} : vector<4x4xf32> to vector<4x1xf32>
    %c1_113 = arith.constant 1 : index
    %c133_114 = arith.constant 133 : index
    %272 = vector.load %arg8[%c1_113, %c133_114] : memref<4x640xf32, #tpu.memory_space<vmem>>, vector<1x384xf32>
    %273 = vector.broadcast %271 : vector<4x1xf32> to vector<4x384xf32>
    %274 = vector.broadcast %272 : vector<1x384xf32> to vector<4x384xf32>
    %275 = arith.mulf %273, %274 : vector<4x384xf32>
    %276 = arith.addf %270, %275 : vector<4x384xf32>
    %277 = vector.extract_strided_slice %265 {offsets = [0, 2], sizes = [4, 1], strides = [1, 1]} : vector<4x4xf32> to vector<4x1xf32>
    %c2_115 = arith.constant 2 : index
    %c133_116 = arith.constant 133 : index
    %278 = vector.load %arg8[%c2_115, %c133_116] : memref<4x640xf32, #tpu.memory_space<vmem>>, vector<1x384xf32>
    %279 = vector.broadcast %277 : vector<4x1xf32> to vector<4x384xf32>
    %280 = vector.broadcast %278 : vector<1x384xf32> to vector<4x384xf32>
    %281 = arith.mulf %279, %280 : vector<4x384xf32>
    %282 = arith.addf %276, %281 : vector<4x384xf32>
    %283 = vector.extract_strided_slice %265 {offsets = [0, 3], sizes = [4, 1], strides = [1, 1]} : vector<4x4xf32> to vector<4x1xf32>
    %c3_117 = arith.constant 3 : index
    %c133_118 = arith.constant 133 : index
    %284 = vector.load %arg8[%c3_117, %c133_118] : memref<4x640xf32, #tpu.memory_space<vmem>>, vector<1x384xf32>
    %285 = vector.broadcast %283 : vector<4x1xf32> to vector<4x384xf32>
    %286 = vector.broadcast %284 : vector<1x384xf32> to vector<4x384xf32>
    %287 = arith.mulf %285, %286 : vector<4x384xf32>
    %288 = arith.addf %282, %287 : vector<4x384xf32>
    %289 = arith.addf %263, %288 : vector<4x384xf32>
    %c0_119 = arith.constant 0 : index
    %c128_120 = arith.constant 128 : index
    %290 = vector.load %arg8[%c0_119, %c128_120] : memref<4x640xf32, #tpu.memory_space<vmem>>, vector<4x384xf32>
    %291 = arith.addf %290, %289 : vector<4x384xf32>
    %c0_121 = arith.constant 0 : index
    %c0_122 = arith.constant 0 : index
    %c0_123 = arith.constant 0 : index
    %292 = vector.load %arg7[%c0_121, %c0_122, %c0_123] : memref<1x4x384xf32, #tpu.memory_space<vmem>>, vector<1x4x384xf32>
    %293 = vector.shape_cast %292 : vector<1x4x384xf32> to vector<4x384xf32>
    %294 = vector.shape_cast %291 : vector<4x384xf32> to vector<1x4x384xf32>
    tpu.vector_store %arg7[%c0_121, %c0_122, %c0_123], %294 {strides = array<i32>} : memref<1x4x384xf32, #tpu.memory_space<vmem>>, vector<1x4x384xf32>,
    return
  }
  func.func @transform_0(%arg0: i32, %arg1: i32) -> (i32, i32) {
    %c0_i32 = arith.constant 0 : i32
    %c0_i32_0 = arith.constant 0 : i32
    %c0_i32_1 = arith.constant 0 : i32
    return %c0_i32, %c0_i32_0 : i32, i32
  }
  func.func @transform_1(%arg0: i32, %arg1: i32) -> (i32, i32, i32) {
    %c0_i32 = arith.constant 0 : i32
    %c0_i32_0 = arith.constant 0 : i32
    %c0_i32_1 = arith.constant 0 : i32
    %c0_i32_2 = arith.constant 0 : i32
    return %c0_i32, %c0_i32_0, %c0_i32_1 : i32, i32, i32
  }
  func.func @transform_2(%arg0: i32, %arg1: i32) -> (i32, i32, i32) {
    %c0_i32 = arith.constant 0 : i32
    %c0_i32_0 = arith.constant 0 : i32
    return %arg0, %c0_i32, %arg1 : i32, i32, i32
  }
  func.func @transform_3(%arg0: i32, %arg1: i32) -> (i32, i32, i32) {
    %c3_i32 = arith.constant 3 : i32
    %0 = arith.muli %arg1, %c3_i32 : i32
    %c1_i32 = arith.constant 1 : i32
    %1 = arith.subi %0, %c1_i32 : i32
    %c0_i32 = arith.constant 0 : i32
    %2 = arith.maxsi %1, %c0_i32 : i32
    %c0_i32_0 = arith.constant 0 : i32
    %c0_i32_1 = arith.constant 0 : i32
    return %arg0, %c0_i32_0, %2 : i32, i32, i32
  }
  func.func @transform_4(%arg0: i32, %arg1: i32) -> (i32, i32, i32) {
    %c1_i32 = arith.constant 1 : i32
    %0 = arith.addi %arg1, %c1_i32 : i32
    %c3_i32 = arith.constant 3 : i32
    %1 = arith.muli %0, %c3_i32 : i32
    %c2_i32 = arith.constant 2 : i32
    %2 = arith.minsi %1, %c2_i32 : i32
    %c0_i32 = arith.constant 0 : i32
    %c0_i32_0 = arith.constant 0 : i32
    return %arg0, %c0_i32, %2 : i32, i32, i32
  }
  func.func @transform_5(%arg0: i32, %arg1: i32) -> (i32, i32, i32) {
    %c0_i32 = arith.constant 0 : i32
    %c0_i32_0 = arith.constant 0 : i32
    return %arg0, %c0_i32, %arg1 : i32, i32, i32
  }
}

</mosaic_0001>

<llo_original>
// kernel: tpu_custom_call.1
$region0: #{tpu_custom_call.1}
  #allocation0 [shape = 'u32[]', space=smem, size = 0x4, offset = 0x4, fixed_abs, tag = 'smem constant byte address 0x4 - core index']
  #allocation1 [shape = 'u32[144,128]{1,0:T(1,128)}', space=vmem, size = 0x12000, scoped, tag = 'internal scratch']
  #allocation2 [shape = 'f32[4,640]{1,0:T(4,128)}', space=vmem, size = 0x2800, scoped, tag = 'scratch operand']
  %s0 = inlined_call_operand.vmem [shape: f32[4,1], index: 0, kind: input, shape index: {}]
  %s1 = inlined_call_operand.vmem [shape: f32[9,4,4], index: 1, kind: input, shape index: {}]
  %s2 = inlined_call_operand.vmem [shape: f32[2,4,384], index: 2, kind: input, shape index: {}]
  %s3 = inlined_call_operand.vmem [shape: f32[2,4,384], index: 3, kind: input, shape index: {}]
  %s4 = inlined_call_operand.vmem [shape: f32[2,4,384], index: 4, kind: input, shape index: {}]
  %s5 = inlined_call_operand.hbm [shape: f32[2,4,384], index: 5, kind: output, shape index: {}]
  %s6 = sld [smem:[#allocation0]]
  $region61: #{tpu_custom_call.1} parent=0
    _
  %s8 = ssub.s32 1, %s6
  %s9 = scalar_select 0, %s8, %s6
  $region1: #{tpu_custom_call.1} parent=0
    #allocation3 [shape = 'u8[12288]{0}', space=vmem, size = 0x3000, scoped, tag = 'output window, operand 0']
    #allocation4 [shape = 's32[2]{0}', space=sflag, size = 0x8, scoped, tag = 'scoped memory for tpu_custom_call.1']
    %10 = vsyncpa [#allocation4], 0
    %s11 = scalar_lea.sflag [#allocation4], 1
    %12 = vsyncpa %s11, 0
    loop: start=0, step=1, limit=4
    $region2: #{tpu_custom_call.1} parent=1 // loop_pre_header
      _
    $region3: #{tpu_custom_call.1} parent=1 // loop_header
      %s14 = sphi 0, %s18
      %p15 = scmp.ge.s32.totalorder %s14, 4
      %s21 = sphi 0, %s33
      %s22 = sphi 0, %s29
      %s23 = sphi 0, %s21
      %s24 = sphi 0, %s22
      %s25 = sphi 0, %s23
      %s26 = sphi 0, %s24
      %s34 = sphi 0, %s34
      %s36 = sphi 0, %s34
      %s37 = sphi 0, %s36
      %s51 = sphi 0, %s37
      %s55 = sphi 0, %s55
      %s57 = sphi 0, %s55
      %s58 = sphi 0, %s57
      %s72 = sphi 0, %s58
      %s80 = sphi 0, %s82
      %s83 = sphi 0, %s80
      %s84 = sphi 0, %s83
      %s100 = sphi 0, %s84
      %s116 = sphi 0, %s118
      %s119 = sphi 0, %s116
      %s120 = sphi 0, %s119
      %s136 = sphi 0, %s120
      %s152 = sphi 0, %s154
      %s155 = sphi 0, %s152
      %s156 = sphi 0, %s155
      %s172 = sphi 0, %s156
      %s180 = sphi 0, %s182
      %s183 = sphi 0, %s180
      %s184 = sphi 0, %s183
      %s200 = sphi 0, %s184
    $region4: #{tpu_custom_call.1} parent=1 // loop_header_branch
      %17 = sbr.rel (%p15) target = $region8
    $region5: #{tpu_custom_call.1} parent=1 // loop_body
      %s19 = ssub.s32 %s14, 1
      %s20 = ssub.s32 %s14, 2
      %s27 = sadd.s32 1, %s22
      %p28 = scmp.ge.s32.totalorder %s27, 1
      %s29 = scalar_select %p28, 0, %s27
      %s30 = sadd.s32 1, %s21
      %s31 = scalar_select %p28, %s30, %s21
      %p32 = scmp.ge.s32.totalorder %s31, 2
      %s33 = scalar_select %p32, 0, %s31
      %s35 = sadd.s32 %s34, 1
      %p38 = scmp.eq.s32.totalorder %s14, 1
      %p39 = scmp.ne.s32.totalorder %s34, %s36
      %p40 = scmp.eq.s32.totalorder %s14, 0
      %p41 = por %p39, %p40
      %p42 = scmp.ne.s32.totalorder %s34, %s36
      %p43 = scmp.eq.s32.totalorder %s19, 1
      %p44 = por %p42, %p43
      %p45 = scmp.ne.s32.totalorder %s36, %s37
      %p46 = scmp.eq.s32.totalorder %s19, 0
      %p47 = por %p45, %p46
      %p48 = scmp.ne.s32.totalorder %s36, %s37
      %p49 = scmp.eq.s32.totalorder %s20, 1
      %p50 = por %p48, %p49
      %p52 = scmp.ne.s32.totalorder %s37, %s51
      %p53 = scmp.eq.s32.totalorder %s20, 0
      %p54 = por %p52, %p53
      %s56 = sadd.s32 %s55, 1
      %p59 = scmp.eq.s32.totalorder %s14, 1
      %p60 = scmp.ne.s32.totalorder %s55, %s57
      %p61 = scmp.eq.s32.totalorder %s14, 0
      %p62 = por %p60, %p61
      %p63 = scmp.ne.s32.totalorder %s55, %s57
      %p64 = scmp.eq.s32.totalorder %s19, 1
      %p65 = por %p63, %p64
      %p66 = scmp.ne.s32.totalorder %s57, %s58
      %p67 = scmp.eq.s32.totalorder %s19, 0
      %p68 = por %p66, %p67
      %p69 = scmp.ne.s32.totalorder %s57, %s58
      %p70 = scmp.eq.s32.totalorder %s20, 1
      %p71 = por %p69, %p70
      %p73 = scmp.ne.s32.totalorder %s58, %s72
      %p74 = scmp.eq.s32.totalorder %s20, 0
      %p75 = por %p73, %p74
      %s76 = ssub.s32 %s21, %s33
      %s77 = ssub.s32 %s22, %s29
      %s78 = sor.u32 %s76, %s77
      %p79 = scmp.eq.s32.totalorder %s78, 0
      %s81 = sadd.s32 %s80, 1
      %s82 = scalar_select %p79, %s80, %s81
      %p85 = pneg %p79
      %p86 = scmp.eq.s32.totalorder %s14, 1
      %p87 = por %p85, %p86
      %p88 = scmp.ne.s32.totalorder %s80, %s83
      %p89 = scmp.eq.s32.totalorder %s14, 0
      %p90 = por %p88, %p89
      %p91 = scmp.ne.s32.totalorder %s80, %s83
      %p92 = scmp.eq.s32.totalorder %s19, 1
      %p93 = por %p91, %p92
      %p94 = scmp.ne.s32.totalorder %s83, %s84
      %p95 = scmp.eq.s32.totalorder %s19, 0
      %p96 = por %p94, %p95
      %p97 = scmp.ne.s32.totalorder %s83, %s84
      %p98 = scmp.eq.s32.totalorder %s20, 1
      %p99 = por %p97, %p98
      %p101 = scmp.ne.s32.totalorder %s84, %s100
      %p102 = scmp.eq.s32.totalorder %s20, 0
      %p103 = por %p101, %p102
      %s104 = smul.u32 %s22, 3
      %s105 = ssub.s32 %s104, 1
      %p106 = scmp.gt.s32.totalorder %s105, 0
      %s107 = scalar_select %p106, %s105, 0
      %s108 = smul.u32 %s29, 3
      %s109 = ssub.s32 %s108, 1
      %p110 = scmp.gt.s32.totalorder %s109, 0
      %s111 = scalar_select %p110, %s109, 0
      %s112 = ssub.s32 %s21, %s33
      %s113 = ssub.s32 %s107, %s111
      %s114 = sor.u32 %s112, %s113
      %p115 = scmp.eq.s32.totalorder %s114, 0
      %s117 = sadd.s32 %s116, 1
      %s118 = scalar_select %p115, %s116, %s117
      %p121 = pneg %p115
      %p122 = scmp.eq.s32.totalorder %s14, 1
      %p123 = por %p121, %p122
      %p124 = scmp.ne.s32.totalorder %s116, %s119
      %p125 = scmp.eq.s32.totalorder %s14, 0
      %p126 = por %p124, %p125
      %p127 = scmp.ne.s32.totalorder %s116, %s119
      %p128 = scmp.eq.s32.totalorder %s19, 1
      %p129 = por %p127, %p128
      %p130 = scmp.ne.s32.totalorder %s119, %s120
      %p131 = scmp.eq.s32.totalorder %s19, 0
      %p132 = por %p130, %p131
      %p133 = scmp.ne.s32.totalorder %s119, %s120
      %p134 = scmp.eq.s32.totalorder %s20, 1
      %p135 = por %p133, %p134
      %p137 = scmp.ne.s32.totalorder %s120, %s136
      %p138 = scmp.eq.s32.totalorder %s20, 0
      %p139 = por %p137, %p138
      %s140 = sadd.s32 %s22, 1
      %s141 = smul.u32 %s140, 3
      %p142 = scmp.lt.s32.totalorder %s141, 2
      %s143 = scalar_select %p142, %s141, 2
      %s144 = sadd.s32 %s29, 1
      %s145 = smul.u32 %s144, 3
      %p146 = scmp.lt.s32.totalorder %s145, 2
      %s147 = scalar_select %p146, %s145, 2
      %s148 = ssub.s32 %s21, %s33
      %s149 = ssub.s32 %s143, %s147
      %s150 = sor.u32 %s148, %s149
      %p151 = scmp.eq.s32.totalorder %s150, 0
      %s153 = sadd.s32 %s152, 1
      %s154 = scalar_select %p151, %s152, %s153
      %p157 = pneg %p151
      %p158 = scmp.eq.s32.totalorder %s14, 1
      %p159 = por %p157, %p158
      %p160 = scmp.ne.s32.totalorder %s152, %s155
      %p161 = scmp.eq.s32.totalorder %s14, 0
      %p162 = por %p160, %p161
      %p163 = scmp.ne.s32.totalorder %s152, %s155
      %p164 = scmp.eq.s32.totalorder %s19, 1
      %p165 = por %p163, %p164
      %p166 = scmp.ne.s32.totalorder %s155, %s156
      %p167 = scmp.eq.s32.totalorder %s19, 0
      %p168 = por %p166, %p167
      %p169 = scmp.ne.s32.totalorder %s155, %s156
      %p170 = scmp.eq.s32.totalorder %s20, 1
      %p171 = por %p169, %p170
      %p173 = scmp.ne.s32.totalorder %s156, %s172
      %p174 = scmp.eq.s32.totalorder %s20, 0
      %p175 = por %p173, %p174
      %s176 = ssub.s32 %s21, %s33
      %s177 = ssub.s32 %s22, %s29
      %s178 = sor.u32 %s176, %s177
      %p179 = scmp.eq.s32.totalorder %s178, 0
      %s181 = sadd.s32 %s180, 1
      %s182 = scalar_select %p179, %s180, %s181
      %p185 = pneg %p179
      %p186 = scmp.eq.s32.totalorder %s14, 1
      %p187 = por %p185, %p186
      %p188 = scmp.ne.s32.totalorder %s180, %s183
      %p189 = scmp.eq.s32.totalorder %s14, 0
      %p190 = por %p188, %p189
      %p191 = scmp.ne.s32.totalorder %s180, %s183
      %p192 = scmp.eq.s32.totalorder %s19, 1
      %p193 = por %p191, %p192
      %p194 = scmp.ne.s32.totalorder %s183, %s184
      %p195 = scmp.eq.s32.totalorder %s19, 0
      %p196 = por %p194, %p195
      %p197 = scmp.ne.s32.totalorder %s183, %s184
      %p198 = scmp.eq.s32.totalorder %s20, 1
      %p199 = por %p197, %p198
      %p201 = scmp.ne.s32.totalorder %s184, %s200
      %p202 = scmp.eq.s32.totalorder %s20, 0
      %p203 = por %p201, %p202
      %p204 = scmp.le.s32.totalorder 1, %s14
      %p205 = scmp.lt.s32.totalorder %s14, 3
      %p206 = pnand %p204, %p205
      %p207 = pneg %p206
      // Predicated region
      $region9: #{tpu_custom_call.1} parent=5 // pred_check
        _
      $region10: #{tpu_custom_call.1} parent=5 // pred_check_branch
        %209 = sbr.rel (%p206) target = $region12
      $region11: #{tpu_custom_call.1} parent=5 // pred_region
        %s210 = ssub.s32 %s14, 1
        // Predicated region
        $region13: #{tpu_custom_call.1} parent=11 // pred_check
          %p211 = pneg %p47
        $region14: #{tpu_custom_call.1} parent=11 // pred_check_branch
          %213 = sbr.rel (%p211) target = $region16
        $region15: #{tpu_custom_call.1} parent=11 // pred_region
          _
        $region16: #{tpu_custom_call.1} parent=11 // pred_fallthru
          _
        // Predicated region
        $region17: #{tpu_custom_call.1} parent=11 // pred_check
          %p214 = pneg %p68
        $region18: #{tpu_custom_call.1} parent=11 // pred_check_branch
          %216 = sbr.rel (%p214) target = $region20
        $region19: #{tpu_custom_call.1} parent=11 // pred_region
          _
        $region20: #{tpu_custom_call.1} parent=11 // pred_fallthru
          _
      $region12: #{tpu_custom_call.1} parent=5 // pred_fallthru
        _
      %p217 = scmp.lt.s32.totalorder %s14, 2
      // Predicated region
      $region21: #{tpu_custom_call.1} parent=5 // pred_check
        %p218 = pneg %p217
      $region22: #{tpu_custom_call.1} parent=5 // pred_check_branch
        %220 = sbr.rel (%p218) target = $region24
      $region23: #{tpu_custom_call.1} parent=5 // pred_region
        // Predicated region
        $region25: #{tpu_custom_call.1} parent=23 // pred_check
          %p221 = pneg %p90
        $region26: #{tpu_custom_call.1} parent=23 // pred_check_branch
          %223 = sbr.rel (%p221) target = $region28
        $region27: #{tpu_custom_call.1} parent=23 // pred_region
          %s224 = smul.u32 3, %s22
          %p225 = scmp.lt.s32.totalorder %s21, 1
          %s226 = scalar_select %p225, %s21, 1
          %p227 = scmp.lt.s32.totalorder %s224, 2
          %s228 = scalar_select %p227, %s224, 2
          %s229 = smul.addr %s226, 3
          %s230 = sadd.s32 %s228, %s229
          %s231 = smul.addr %s230, 4
          %s232 = scalar_lea.vmem %s2, %s231
          %s233 = smul.u32 3, %s22
        $region28: #{tpu_custom_call.1} parent=23 // pred_fallthru
          _
        // Predicated region
        $region29: #{tpu_custom_call.1} parent=23 // pred_check
          %p234 = pneg %p126
        $region30: #{tpu_custom_call.1} parent=23 // pred_check_branch
          %236 = sbr.rel (%p234) target = $region32
        $region31: #{tpu_custom_call.1} parent=23 // pred_region
          %s237 = smul.u32 %s22, 3
          %s238 = ssub.s32 %s237, 1
          %p239 = scmp.gt.s32.totalorder %s238, 0
          %s240 = scalar_select %p239, %s238, 0
          %p241 = scmp.lt.s32.totalorder %s21, 1
          %s242 = scalar_select %p241, %s21, 1
          %p243 = scmp.lt.s32.totalorder %s240, 2
          %s244 = scalar_select %p243, %s240, 2
          %s245 = smul.addr %s242, 3
          %s246 = sadd.s32 %s244, %s245
          %s247 = smul.addr %s246, 4
          %s248 = scalar_lea.vmem %s3, %s247
          %s249 = smul.u32 %s22, 3
          %s250 = ssub.s32 %s249, 1
          %p251 = scmp.gt.s32.totalorder %s250, 0
          %s252 = scalar_select %p251, %s250, 0
        $region32: #{tpu_custom_call.1} parent=23 // pred_fallthru
          _
        // Predicated region
        $region33: #{tpu_custom_call.1} parent=23 // pred_check
          %p253 = pneg %p162
        $region34: #{tpu_custom_call.1} parent=23 // pred_check_branch
          %255 = sbr.rel (%p253) target = $region36
        $region35: #{tpu_custom_call.1} parent=23 // pred_region
          %s256 = sadd.s32 %s22, 1
          %s257 = smul.u32 %s256, 3
          %p258 = scmp.lt.s32.totalorder %s257, 2
          %s259 = scalar_select %p258, %s257, 2
          %p260 = scmp.lt.s32.totalorder %s21, 1
          %s261 = scalar_select %p260, %s21, 1
          %p262 = scmp.lt.s32.totalorder %s259, 2
          %s263 = scalar_select %p262, %s259, 2
          %s264 = smul.addr %s261, 3
          %s265 = sadd.s32 %s263, %s264
          %s266 = smul.addr %s265, 4
          %s267 = scalar_lea.vmem %s4, %s266
          %s268 = sadd.s32 %s22, 1
          %s269 = smul.u32 %s268, 3
          %p270 = scmp.lt.s32.totalorder %s269, 2
          %s271 = scalar_select %p270, %s269, 2
        $region36: #{tpu_custom_call.1} parent=23 // pred_fallthru
          _
      $region24: #{tpu_custom_call.1} parent=5 // pred_fallthru
        _
      %p272 = scmp.le.s32.totalorder 1, %s14
      %p273 = scmp.lt.s32.totalorder %s14, 3
      %p274 = pnand %p272, %p273
      %p275 = pneg %p274
      // Predicated region
      $region37: #{tpu_custom_call.1} parent=5 // pred_check
        _
      $region38: #{tpu_custom_call.1} parent=5 // pred_check_branch
        %277 = sbr.rel (%p274) target = $region40
      $region39: #{tpu_custom_call.1} parent=5 // pred_region
        %s278 = ssub.s32 %s14, 1
        %p279 = pneg %p47
        %p280 = pneg %p44
        %p281 = pneg %p68
        %p282 = pneg %p65
        %s283 = smul.u32 3, %s24
        %p284 = scmp.lt.s32.totalorder %s23, 1
        %s285 = scalar_select %p284, %s23, 1
        %p286 = scmp.lt.s32.totalorder %s283, 2
        %s287 = scalar_select %p286, %s283, 2
        %s288 = smul.addr %s285, 3
        %s289 = sadd.s32 %s287, %s288
        %s290 = smul.addr %s289, 4
        %s291 = scalar_lea.vmem %s2, %s290
        %p292 = pneg %p96
        %p293 = pneg %p93
        %s294 = smul.u32 %s24, 3
        %s295 = ssub.s32 %s294, 1
        %p296 = scmp.gt.s32.totalorder %s295, 0
        %s297 = scalar_select %p296, %s295, 0
        %p298 = scmp.lt.s32.totalorder %s23, 1
        %s299 = scalar_select %p298, %s23, 1
        %p300 = scmp.lt.s32.totalorder %s297, 2
        %s301 = scalar_select %p300, %s297, 2
        %s302 = smul.addr %s299, 3
        %s303 = sadd.s32 %s301, %s302
        %s304 = smul.addr %s303, 4
        %s305 = scalar_lea.vmem %s3, %s304
        %p306 = pneg %p132
        %p307 = pneg %p129
        %s308 = sadd.s32 %s24, 1
        %s309 = smul.u32 %s308, 3
        %p310 = scmp.lt.s32.totalorder %s309, 2
        %s311 = scalar_select %p310, %s309, 2
        %p312 = scmp.lt.s32.totalorder %s23, 1
        %s313 = scalar_select %p312, %s23, 1
        %p314 = scmp.lt.s32.totalorder %s311, 2
        %s315 = scalar_select %p314, %s311, 2
        %s316 = smul.addr %s313, 3
        %s317 = sadd.s32 %s315, %s316
        %s318 = smul.addr %s317, 4
        %s319 = scalar_lea.vmem %s4, %s318
        %p320 = pneg %p168
        %p321 = pneg %p165
        %p322 = pneg %p196
        %p323 = pneg %p193
        %s324 = sand.u32 %s183, 1
        %s325 = scalar_lea.sflag [#allocation4], %s324
        %s326 = sand.u32 %s183, 1
        %s327 = smul.addr %s326, 12
        %s328 = scalar_lea.vmem [#allocation3], %s327
        %s329 = smul.u32 3, %s24
        %p330 = scmp.lt.s32.totalorder %s23, 1
        %s331 = scalar_select %p330, %s23, 1
        %p332 = scmp.lt.s32.totalorder %s329, 2
        %s333 = scalar_select %p332, %s329, 2
        %s334 = smul.addr %s331, 3
        %s335 = sadd.s32 %s333, %s334
        %s336 = smul.addr %s335, 4
        %s337 = scalar_lea.vmem %s2, %s336
        %s338 = smul.u32 3, %s24
        %s339 = smul.u32 %s24, 3
        %s340 = ssub.s32 %s339, 1
        %p341 = scmp.gt.s32.totalorder %s340, 0
        %s342 = scalar_select %p341, %s340, 0
        %p343 = scmp.lt.s32.totalorder %s23, 1
        %s344 = scalar_select %p343, %s23, 1
        %p345 = scmp.lt.s32.totalorder %s342, 2
        %s346 = scalar_select %p345, %s342, 2
        %s347 = smul.addr %s344, 3
        %s348 = sadd.s32 %s346, %s347
        %s349 = smul.addr %s348, 4
        %s350 = scalar_lea.vmem %s3, %s349
        %s351 = smul.u32 %s24, 3
        %s352 = ssub.s32 %s351, 1
        %p353 = scmp.gt.s32.totalorder %s352, 0
        %s354 = scalar_select %p353, %s352, 0
        %s355 = sadd.s32 %s24, 1
        %s356 = smul.u32 %s355, 3
        %p357 = scmp.lt.s32.totalorder %s356, 2
        %s358 = scalar_select %p357, %s356, 2
        %p359 = scmp.lt.s32.totalorder %s23, 1
        %s360 = scalar_select %p359, %s23, 1
        %p361 = scmp.lt.s32.totalorder %s358, 2
        %s362 = scalar_select %p361, %s358, 2
        %s363 = smul.addr %s360, 3
        %s364 = sadd.s32 %s362, %s363
        %s365 = smul.addr %s364, 4
        %s366 = scalar_lea.vmem %s4, %s365
        %s367 = sadd.s32 %s24, 1
        %s368 = smul.u32 %s367, 3
        %p369 = scmp.lt.s32.totalorder %s368, 2
        %s370 = scalar_select %p369, %s368, 2
        %s371 = smul.u32 3, %s24
        %v372 = vld [vmem:[%s0] sm:$0xf]
        %v373 = vadd.f32 %v372, 1e-09
        %v374 = vrcp.pop %v373
        %v375 = vmul.f32 1.0, %v374
        %v376 = vld [vmem:[%s337] sm:$0xff]
        %v377 = vld [vmem:[%s337 + $0x8] sm:$0xf]
        %379 = vset.pattern.permute.xlu0 0
        %380 = vperm.xlu0 %379, %v372
        %v381 = vpop.permute.xlu0 %380
        %v384 = vcombine.high %v376, %v376
        %v386 = vmul.f32 %v381, %v376
        %v387 = vmul.f32 %v381, %v384
        %v388 = vmul.f32 %v381, %v377
        %v389 = vand.u32 2147483647, %v386
        %vm390 = vcmp.le.f32.partialorder %v389, 0.7853982
        %vm391 = vcmp.lt.s32.totalorder %v386, 0
        %v392 = vand.u32 %v386, 2139095040
        %v393 = vshrl.u32 %v392, 23
        %v394 = vsub.s32 %v393, 127
        %v395 = vand.u32 2147483647, %v386
        %v396 = vand.u32 %v395, 8388607
        %v397 = vor.u32 %v396, 8388608
        %v398 = vsub.s32 0, %v397
        %v399 = vadd.s32 %v394, 1
        %vm400 = vcmp.gt.s32.totalorder %v399, 0
        %v401 = vsel %vm400, %v399, 0
        %v402 = vshrl.u32 %v401, 5
        %v403 = vand.u32 %v401, 31
        %v404 = vsub.s32 32, %v403
        %v405 = vshrl.u32 683565275, %v404
        %v406 = vshll.u32 683565275, %v403
        %v407 = vshrl.u32 2475754826, %v404
        %v408 = vor.u32 %v406, %v407
        %v409 = vshll.u32 2475754826, %v403
        %v410 = vshrl.u32 2131351028, %v404
        %v411 = vor.u32 %v409, %v410
        %v412 = vshll.u32 2131351028, %v403
        %v413 = vshrl.u32 2102212464, %v404
        %v414 = vor.u32 %v412, %v413
        %v415 = vshll.u32 2102212464, %v403
        %v416 = vshrl.u32 920167782, %v404
        %v417 = vor.u32 %v415, %v416
        %v418 = vshll.u32 920167782, %v403
        %v419 = vshrl.u32 1326507024, %v404
        %v420 = vor.u32 %v418, %v419
        %vm421 = vcmp.lt.s32.totalorder %v402, 1
        %vm422 = vcmp.lt.s32.totalorder %v402, 2
        %vm423 = vcmp.lt.s32.totalorder %v402, 3
        %vm424 = vcmp.lt.s32.totalorder %v402, 4
        %v425 = vsel %vm421, %v405, %v408
        %v426 = vsel %vm424, %v414, 2102212464
        %v427 = vsel %vm423, %v411, %v426
        %v428 = vsel %vm422, %v425, %v427
        %v429 = vsel %vm421, %v408, %v411
        %v430 = vsel %vm424, %v417, 920167782
        %v431 = vsel %vm423, %v414, %v430
        %v432 = vsel %vm422, %v429, %v431
        %v433 = vsel %vm421, %v411, %v414
        %v434 = vsel %vm424, %v420, 1326507024
        %v435 = vsel %vm423, %v417, %v434
        %v436 = vsel %vm422, %v433, %v435
        %v437 = vshll.u32 %v397, 8
        %v438 = vmul.u32.u64.compose %v437, %v436
        %v439 = vextract.low.u32 %v438
        %v440 = vextract.high.u32 %v438
        %v441 = vmul.u32.u64.compose %v437, %v432
        %v442 = vextract.low.u32 %v441
        %v443 = vextract.high.u32 %v441
        %v444 = vmul.u32 %v437, %v428
        %v445 = vadd.s32 %v440, %v442
        %vm446 = vc.u32 %v440, %v442
        %v447 = vadd.s32 %v443, 1
        %v448 = vsel %vm446, %v447, %v443
        %v449 = vadd.s32 %v444, %v448
        %v450 = vadd.s32 %v449, 536870912
        %v451 = vshrl.u32 %v450, 30
        %v452 = vshll.u32 %v451, 30
        %v453 = vsub.s32 %v449, %v452
        %vm454 = vcmp.lt.s32.totalorder %v453, 0
        %v455 = vsub.s32 0, %v453
        %v456 = vsel %vm454, %v455, %v453
        %v457 = vclz %v456
        %v458 = vsub.s32 %v457, 2
        %vm459 = vcmp.gt.s32.totalorder 0, %v458
        %v460 = vsel %vm459, 0, %v458
        %v461 = vsub.s32 32, %v460
        %v462 = vshll.u32 %v453, %v460
        %v463 = vshrl.u32 %v445, %v461
        %v464 = vor.u32 %v462, %v463
        %v465 = vsub.s32 4294967266, %v460
        %v466 = vadd.s32 %v465, 127
        %v467 = vshll.u32 %v466, 23
        %v468 = vor.u32 4788187, %v467
        %v469 = vand.u32 2147483647, %v468
        %v471 = vcvt.s32.f32 %v464
        %v472 = vmul.f32 %v471, %v469
        %v473 = vxor.u32 %v472, 2147483648
        %v474 = vsel %vm391, %v473, %v472
        %v475 = vsub.s32 4, %v451
        %v476 = vsel %vm391, %v475, %v451
        %v477 = vsel %vm390, %v386, %v474
        %v478 = vsel %vm390, 0, %v476
        %v479 = vcosq.f32.pop %v477
        %v480 = vsinq.f32.pop %v477
        %vm481 = vweird.f32 %v386
        %v482 = vadd.s32 %v478, 3
        %v483 = vand.u32 %v482, 3
        %vm484 = vcmp.lt.s32.totalorder %v483, 2
        %vm485 = vcmp.eq.s32.totalorder %v483, 0
        %v486 = vxor.u32 %v480, 2147483648
        %v487 = vsel %vm485, %v479, %v486
        %vm488 = vcmp.eq.s32.totalorder %v483, 2
        %v489 = vxor.u32 %v479, 2147483648
        %v490 = vsel %vm488, %v489, %v480
        %v491 = vsel %vm484, %v487, %v490
        %v492 = vsel %vm481, nan, %v491
        %v493 = vand.u32 2147483647, %v387
        %vm494 = vcmp.le.f32.partialorder %v493, 0.7853982
        %vm495 = vcmp.lt.s32.totalorder %v387, 0
        %v496 = vand.u32 %v387, 2139095040
        %v497 = vshrl.u32 %v496, 23
        %v498 = vsub.s32 %v497, 127
        %v499 = vand.u32 2147483647, %v387
        %v500 = vand.u32 %v499, 8388607
        %v501 = vor.u32 %v500, 8388608
        %v502 = vsub.s32 0, %v501
        %v503 = vadd.s32 %v498, 1
        %vm504 = vcmp.gt.s32.totalorder %v503, 0
        %v505 = vsel %vm504, %v503, 0
        %v506 = vshrl.u32 %v505, 5
        %v507 = vand.u32 %v505, 31
        %v508 = vsub.s32 32, %v507
        %v509 = vshrl.u32 683565275, %v508
        %v510 = vshll.u32 683565275, %v507
        %v511 = vshrl.u32 2475754826, %v508
        %v512 = vor.u32 %v510, %v511
        %v513 = vshll.u32 2475754826, %v507
        %v514 = vshrl.u32 2131351028, %v508
        %v515 = vor.u32 %v513, %v514
        %v516 = vshll.u32 2131351028, %v507
        %v517 = vshrl.u32 2102212464, %v508
        %v518 = vor.u32 %v516, %v517
        %v519 = vshll.u32 2102212464, %v507
        %v520 = vshrl.u32 920167782, %v508
        %v521 = vor.u32 %v519, %v520
        %v522 = vshll.u32 920167782, %v507
        %v523 = vshrl.u32 1326507024, %v508
        %v524 = vor.u32 %v522, %v523
        %vm525 = vcmp.lt.s32.totalorder %v506, 1
        %vm526 = vcmp.lt.s32.totalorder %v506, 2
        %vm527 = vcmp.lt.s32.totalorder %v506, 3
        %vm528 = vcmp.lt.s32.totalorder %v506, 4
        %v529 = vsel %vm525, %v509, %v512
        %v530 = vsel %vm528, %v518, 2102212464
        %v531 = vsel %vm527, %v515, %v530
        %v532 = vsel %vm526, %v529, %v531
        %v533 = vsel %vm525, %v512, %v515
        %v534 = vsel %vm528, %v521, 920167782
        %v535 = vsel %vm527, %v518, %v534
        %v536 = vsel %vm526, %v533, %v535
        %v537 = vsel %vm525, %v515, %v518
        %v538 = vsel %vm528, %v524, 1326507024
        %v539 = vsel %vm527, %v521, %v538
        %v540 = vsel %vm526, %v537, %v539
        %v541 = vshll.u32 %v501, 8
        %v542 = vmul.u32.u64.compose %v541, %v540
        %v543 = vextract.low.u32 %v542
        %v544 = vextract.high.u32 %v542
        %v545 = vmul.u32.u64.compose %v541, %v536
        %v546 = vextract.low.u32 %v545
        %v547 = vextract.high.u32 %v545
        %v548 = vmul.u32 %v541, %v532
        %v549 = vadd.s32 %v544, %v546
        %vm550 = vc.u32 %v544, %v546
        %v551 = vadd.s32 %v547, 1
        %v552 = vsel %vm550, %v551, %v547
        %v553 = vadd.s32 %v548, %v552
        %v554 = vadd.s32 %v553, 536870912
        %v555 = vshrl.u32 %v554, 30
        %v556 = vshll.u32 %v555, 30
        %v557 = vsub.s32 %v553, %v556
        %vm558 = vcmp.lt.s32.totalorder %v557, 0
        %v559 = vsub.s32 0, %v557
        %v560 = vsel %vm558, %v559, %v557
        %v561 = vclz %v560
        %v562 = vsub.s32 %v561, 2
        %vm563 = vcmp.gt.s32.totalorder 0, %v562
        %v564 = vsel %vm563, 0, %v562
        %v565 = vsub.s32 32, %v564
        %v566 = vshll.u32 %v557, %v564
        %v567 = vshrl.u32 %v549, %v565
        %v568 = vor.u32 %v566, %v567
        %v569 = vsub.s32 4294967266, %v564
        %v570 = vadd.s32 %v569, 127
        %v571 = vshll.u32 %v570, 23
        %v572 = vor.u32 4788187, %v571
        %v573 = vand.u32 2147483647, %v572
        %v575 = vcvt.s32.f32 %v568
        %v576 = vmul.f32 %v575, %v573
        %v577 = vxor.u32 %v576, 2147483648
        %v578 = vsel %vm495, %v577, %v576
        %v579 = vsub.s32 4, %v555
        %v580 = vsel %vm495, %v579, %v555
        %v581 = vsel %vm494, %v387, %v578
        %v582 = vsel %vm494, 0, %v580
        %v583 = vcosq.f32.pop %v581
        %v584 = vsinq.f32.pop %v581
        %vm585 = vweird.f32 %v387
        %v586 = vadd.s32 %v582, 3
        %v587 = vand.u32 %v586, 3
        %vm588 = vcmp.lt.s32.totalorder %v587, 2
        %vm589 = vcmp.eq.s32.totalorder %v587, 0
        %v590 = vxor.u32 %v584, 2147483648
        %v591 = vsel %vm589, %v583, %v590
        %vm592 = vcmp.eq.s32.totalorder %v587, 2
        %v593 = vxor.u32 %v583, 2147483648
        %v594 = vsel %vm592, %v593, %v584
        %v595 = vsel %vm588, %v591, %v594
        %v596 = vsel %vm585, nan, %v595
        %v597 = vand.u32 2147483647, %v388
        %vm598 = vcmp.le.f32.partialorder %v597, 0.7853982
        %vm599 = vcmp.lt.s32.totalorder %v388, 0
        %v600 = vand.u32 %v388, 2139095040
        %v601 = vshrl.u32 %v600, 23
        %v602 = vsub.s32 %v601, 127
        %v603 = vand.u32 2147483647, %v388
        %v604 = vand.u32 %v603, 8388607
        %v605 = vor.u32 %v604, 8388608
        %v606 = vsub.s32 0, %v605
        %v607 = vadd.s32 %v602, 1
        %vm608 = vcmp.gt.s32.totalorder %v607, 0
        %v609 = vsel %vm608, %v607, 0
        %v610 = vshrl.u32 %v609, 5
        %v611 = vand.u32 %v609, 31
        %v612 = vsub.s32 32, %v611
        %v613 = vshrl.u32 683565275, %v612
        %v614 = vshll.u32 683565275, %v611
        %v615 = vshrl.u32 2475754826, %v612
        %v616 = vor.u32 %v614, %v615
        %v617 = vshll.u32 2475754826, %v611
        %v618 = vshrl.u32 2131351028, %v612
        %v619 = vor.u32 %v617, %v618
        %v620 = vshll.u32 2131351028, %v611
        %v621 = vshrl.u32 2102212464, %v612
        %v622 = vor.u32 %v620, %v621
        %v623 = vshll.u32 2102212464, %v611
        %v624 = vshrl.u32 920167782, %v612
        %v625 = vor.u32 %v623, %v624
        %v626 = vshll.u32 920167782, %v611
        %v627 = vshrl.u32 1326507024, %v612
        %v628 = vor.u32 %v626, %v627
        %vm629 = vcmp.lt.s32.totalorder %v610, 1
        %vm630 = vcmp.lt.s32.totalorder %v610, 2
        %vm631 = vcmp.lt.s32.totalorder %v610, 3
        %vm632 = vcmp.lt.s32.totalorder %v610, 4
        %v633 = vsel %vm629, %v613, %v616
        %v634 = vsel %vm632, %v622, 2102212464
        %v635 = vsel %vm631, %v619, %v634
        %v636 = vsel %vm630, %v633, %v635
        %v637 = vsel %vm629, %v616, %v619
        %v638 = vsel %vm632, %v625, 920167782
        %v639 = vsel %vm631, %v622, %v638
        %v640 = vsel %vm630, %v637, %v639
        %v641 = vsel %vm629, %v619, %v622
        %v642 = vsel %vm632, %v628, 1326507024
        %v643 = vsel %vm631, %v625, %v642
        %v644 = vsel %vm630, %v641, %v643
        %v645 = vshll.u32 %v605, 8
        %v646 = vmul.u32.u64.compose %v645, %v644
        %v647 = vextract.low.u32 %v646
        %v648 = vextract.high.u32 %v646
        %v649 = vmul.u32.u64.compose %v645, %v640
        %v650 = vextract.low.u32 %v649
        %v651 = vextract.high.u32 %v649
        %v652 = vmul.u32 %v645, %v636
        %v653 = vadd.s32 %v648, %v650
        %vm654 = vc.u32 %v648, %v650
        %v655 = vadd.s32 %v651, 1
        %v656 = vsel %vm654, %v655, %v651
        %v657 = vadd.s32 %v652, %v656
        %v658 = vadd.s32 %v657, 536870912
        %v659 = vshrl.u32 %v658, 30
        %v660 = vshll.u32 %v659, 30
        %v661 = vsub.s32 %v657, %v660
        %vm662 = vcmp.lt.s32.totalorder %v661, 0
        %v663 = vsub.s32 0, %v661
        %v664 = vsel %vm662, %v663, %v661
        %v665 = vclz %v664
        %v666 = vsub.s32 %v665, 2
        %vm667 = vcmp.gt.s32.totalorder 0, %v666
        %v668 = vsel %vm667, 0, %v666
        %v669 = vsub.s32 32, %v668
        %v670 = vshll.u32 %v661, %v668
        %v671 = vshrl.u32 %v653, %v669
        %v672 = vor.u32 %v670, %v671
        %v673 = vsub.s32 4294967266, %v668
        %v674 = vadd.s32 %v673, 127
        %v675 = vshll.u32 %v674, 23
        %v676 = vor.u32 4788187, %v675
        %v677 = vand.u32 2147483647, %v676
        %v679 = vcvt.s32.f32 %v672
        %v680 = vmul.f32 %v679, %v677
        %v681 = vxor.u32 %v680, 2147483648
        %v682 = vsel %vm599, %v681, %v680
        %v683 = vsub.s32 4, %v659
        %v684 = vsel %vm599, %v683, %v659
        %v685 = vsel %vm598, %v388, %v682
        %v686 = vsel %vm598, 0, %v684
        %v687 = vcosq.f32.pop %v685
        %v688 = vsinq.f32.pop %v685
        %vm689 = vweird.f32 %v388
        %v690 = vadd.s32 %v686, 3
        %v691 = vand.u32 %v690, 3
        %vm692 = vcmp.lt.s32.totalorder %v691, 2
        %vm693 = vcmp.eq.s32.totalorder %v691, 0
        %v694 = vxor.u32 %v688, 2147483648
        %v695 = vsel %vm693, %v687, %v694
        %vm696 = vcmp.eq.s32.totalorder %v691, 2
        %v697 = vxor.u32 %v687, 2147483648
        %v698 = vsel %vm696, %v697, %v688
        %v699 = vsel %vm692, %v695, %v698
        %v700 = vsel %vm689, nan, %v699
        %v701 = vmul.f32 %v492, %v492
        %v702 = vmul.f32 %v596, %v596
        %v703 = vmul.f32 %v700, %v700
        %705 = vset.pattern.permute.xlu0 0
        %706 = vperm.xlu0 %705, %v375
        %v707 = vpop.permute.xlu0 %706
        %v709 = vmul.f32 %v707, %v701
        %v710 = vmul.f32 %v707, %v702
        %v711 = vmul.f32 %v707, %v703
        %v714 = vcombine.low %v709, %v710
        %v716 = vadd.f32 %v376, %v714
        %v717 = vadd.f32 %v377, %v711
        %718 = vst [vmem:[#allocation2 + $0x4] sm:$0xff] %v716
        %719 = vst [vmem:[#allocation2 + $0xc] sm:$0xf] %v717
        %v720 = vld [vmem:[%s350] sm:$0xf]
        %v721 = vmul.f32 %v381, %v720
        %v722 = vand.u32 2147483647, %v721
        %vm723 = vcmp.le.f32.partialorder %v722, 0.7853982
        %vm724 = vcmp.lt.s32.totalorder %v721, 0
        %v725 = vand.u32 %v721, 2139095040
        %v726 = vshrl.u32 %v725, 23
        %v727 = vsub.s32 %v726, 127
        %v728 = vand.u32 2147483647, %v721
        %v729 = vand.u32 %v728, 8388607
        %v730 = vor.u32 %v729, 8388608
        %v731 = vsub.s32 0, %v730
        %v732 = vadd.s32 %v727, 1
        %vm733 = vcmp.gt.s32.totalorder %v732, 0
        %v734 = vsel %vm733, %v732, 0
        %v735 = vshrl.u32 %v734, 5
        %v736 = vand.u32 %v734, 31
        %v737 = vsub.s32 32, %v736
        %v738 = vshrl.u32 683565275, %v737
        %v739 = vshll.u32 683565275, %v736
        %v740 = vshrl.u32 2475754826, %v737
        %v741 = vor.u32 %v739, %v740
        %v742 = vshll.u32 2475754826, %v736
        %v743 = vshrl.u32 2131351028, %v737
        %v744 = vor.u32 %v742, %v743
        %v745 = vshll.u32 2131351028, %v736
        %v746 = vshrl.u32 2102212464, %v737
        %v747 = vor.u32 %v745, %v746
        %v748 = vshll.u32 2102212464, %v736
        %v749 = vshrl.u32 920167782, %v737
        %v750 = vor.u32 %v748, %v749
        %v751 = vshll.u32 920167782, %v736
        %v752 = vshrl.u32 1326507024, %v737
        %v753 = vor.u32 %v751, %v752
        %vm754 = vcmp.lt.s32.totalorder %v735, 1
        %vm755 = vcmp.lt.s32.totalorder %v735, 2
        %vm756 = vcmp.lt.s32.totalorder %v735, 3
        %vm757 = vcmp.lt.s32.totalorder %v735, 4
        %v758 = vsel %vm754, %v738, %v741
        %v759 = vsel %vm757, %v747, 2102212464
        %v760 = vsel %vm756, %v744, %v759
        %v761 = vsel %vm755, %v758, %v760
        %v762 = vsel %vm754, %v741, %v744
        %v763 = vsel %vm757, %v750, 920167782
        %v764 = vsel %vm756, %v747, %v763
        %v765 = vsel %vm755, %v762, %v764
        %v766 = vsel %vm754, %v744, %v747
        %v767 = vsel %vm757, %v753, 1326507024
        %v768 = vsel %vm756, %v750, %v767
        %v769 = vsel %vm755, %v766, %v768
        %v770 = vshll.u32 %v730, 8
        %v771 = vmul.u32.u64.compose %v770, %v769
        %v772 = vextract.low.u32 %v771
        %v773 = vextract.high.u32 %v771
        %v774 = vmul.u32.u64.compose %v770, %v765
        %v775 = vextract.low.u32 %v774
        %v776 = vextract.high.u32 %v774
        %v777 = vmul.u32 %v770, %v761
        %v778 = vadd.s32 %v773, %v775
        %vm779 = vc.u32 %v773, %v775
        %v780 = vadd.s32 %v776, 1
        %v781 = vsel %vm779, %v780, %v776
        %v782 = vadd.s32 %v777, %v781
        %v783 = vadd.s32 %v782, 536870912
        %v784 = vshrl.u32 %v783, 30
        %v785 = vshll.u32 %v784, 30
        %v786 = vsub.s32 %v782, %v785
        %vm787 = vcmp.lt.s32.totalorder %v786, 0
        %v788 = vsub.s32 0, %v786
        %v789 = vsel %vm787, %v788, %v786
        %v790 = vclz %v789
        %v791 = vsub.s32 %v790, 2
        %vm792 = vcmp.gt.s32.totalorder 0, %v791
        %v793 = vsel %vm792, 0, %v791
        %v794 = vsub.s32 32, %v793
        %v795 = vshll.u32 %v786, %v793
        %v796 = vshrl.u32 %v778, %v794
        %v797 = vor.u32 %v795, %v796
        %v798 = vsub.s32 4294967266, %v793
        %v799 = vadd.s32 %v798, 127
        %v800 = vshll.u32 %v799, 23
        %v801 = vor.u32 4788187, %v800
        %v802 = vand.u32 2147483647, %v801
        %v804 = vcvt.s32.f32 %v797
        %v805 = vmul.f32 %v804, %v802
        %v806 = vxor.u32 %v805, 2147483648
        %v807 = vsel %vm724, %v806, %v805
        %v808 = vsub.s32 4, %v784
        %v809 = vsel %vm724, %v808, %v784
        %v810 = vsel %vm723, %v721, %v807
        %v811 = vsel %vm723, 0, %v809
        %v812 = vcosq.f32.pop %v810
        %v813 = vsinq.f32.pop %v810
        %vm814 = vweird.f32 %v721
        %v815 = vadd.s32 %v811, 3
        %v816 = vand.u32 %v815, 3
        %vm817 = vcmp.lt.s32.totalorder %v816, 2
        %vm818 = vcmp.eq.s32.totalorder %v816, 0
        %v819 = vxor.u32 %v813, 2147483648
        %v820 = vsel %vm818, %v812, %v819
        %vm821 = vcmp.eq.s32.totalorder %v816, 2
        %v822 = vxor.u32 %v812, 2147483648
        %v823 = vsel %vm821, %v822, %v813
        %v824 = vsel %vm817, %v820, %v823
        %v825 = vsel %vm814, nan, %v824
        %v826 = vmul.f32 %v825, %v825
        %v827 = vmul.f32 %v707, %v826
        %v828 = vadd.f32 %v720, %v827
        %p829 = scmp.gt.s32.totalorder %s24, 0
        %s830 = scalar_select %p829, 1, 0
        %v831 = vstv %s830
        %vm832 = vcmp.eq.s32.totalorder %v831, 1
        %v833 = vsel %vm832, %v828, 0.0
        %vm834 = vcmask 1044408
        %835 = vst.msk [vmem:[#allocation2] sm:$0xf] %vm834, %v833
        %v836 = vld [vmem:[%s366] sm:$0xf]
        %v837 = vmul.f32 %v381, %v836
        %v838 = vand.u32 2147483647, %v837
        %vm839 = vcmp.le.f32.partialorder %v838, 0.7853982
        %vm840 = vcmp.lt.s32.totalorder %v837, 0
        %v841 = vand.u32 %v837, 2139095040
        %v842 = vshrl.u32 %v841, 23
        %v843 = vsub.s32 %v842, 127
        %v844 = vand.u32 2147483647, %v837
        %v845 = vand.u32 %v844, 8388607
        %v846 = vor.u32 %v845, 8388608
        %v847 = vsub.s32 0, %v846
        %v848 = vadd.s32 %v843, 1
        %vm849 = vcmp.gt.s32.totalorder %v848, 0
        %v850 = vsel %vm849, %v848, 0
        %v851 = vshrl.u32 %v850, 5
        %v852 = vand.u32 %v850, 31
        %v853 = vsub.s32 32, %v852
        %v854 = vshrl.u32 683565275, %v853
        %v855 = vshll.u32 683565275, %v852
        %v856 = vshrl.u32 2475754826, %v853
        %v857 = vor.u32 %v855, %v856
        %v858 = vshll.u32 2475754826, %v852
        %v859 = vshrl.u32 2131351028, %v853
        %v860 = vor.u32 %v858, %v859
        %v861 = vshll.u32 2131351028, %v852
        %v862 = vshrl.u32 2102212464, %v853
        %v863 = vor.u32 %v861, %v862
        %v864 = vshll.u32 2102212464, %v852
        %v865 = vshrl.u32 920167782, %v853
        %v866 = vor.u32 %v864, %v865
        %v867 = vshll.u32 920167782, %v852
        %v868 = vshrl.u32 1326507024, %v853
        %v869 = vor.u32 %v867, %v868
        %vm870 = vcmp.lt.s32.totalorder %v851, 1
        %vm871 = vcmp.lt.s32.totalorder %v851, 2
        %vm872 = vcmp.lt.s32.totalorder %v851, 3
        %vm873 = vcmp.lt.s32.totalorder %v851, 4
        %v874 = vsel %vm870, %v854, %v857
        %v875 = vsel %vm873, %v863, 2102212464
        %v876 = vsel %vm872, %v860, %v875
        %v877 = vsel %vm871, %v874, %v876
        %v878 = vsel %vm870, %v857, %v860
        %v879 = vsel %vm873, %v866, 920167782
        %v880 = vsel %vm872, %v863, %v879
        %v881 = vsel %vm871, %v878, %v880
        %v882 = vsel %vm870, %v860, %v863
        %v883 = vsel %vm873, %v869, 1326507024
        %v884 = vsel %vm872, %v866, %v883
        %v885 = vsel %vm871, %v882, %v884
        %v886 = vshll.u32 %v846, 8
        %v887 = vmul.u32.u64.compose %v886, %v885
        %v888 = vextract.low.u32 %v887
        %v889 = vextract.high.u32 %v887
        %v890 = vmul.u32.u64.compose %v886, %v881
        %v891 = vextract.low.u32 %v890
        %v892 = vextract.high.u32 %v890
        %v893 = vmul.u32 %v886, %v877
        %v894 = vadd.s32 %v889, %v891
        %vm895 = vc.u32 %v889, %v891
        %v896 = vadd.s32 %v892, 1
        %v897 = vsel %vm895, %v896, %v892
        %v898 = vadd.s32 %v893, %v897
        %v899 = vadd.s32 %v898, 536870912
        %v900 = vshrl.u32 %v899, 30
        %v901 = vshll.u32 %v900, 30
        %v902 = vsub.s32 %v898, %v901
        %vm903 = vcmp.lt.s32.totalorder %v902, 0
        %v904 = vsub.s32 0, %v902
        %v905 = vsel %vm903, %v904, %v902
        %v906 = vclz %v905
        %v907 = vsub.s32 %v906, 2
        %vm908 = vcmp.gt.s32.totalorder 0, %v907
        %v909 = vsel %vm908, 0, %v907
        %v910 = vsub.s32 32, %v909
        %v911 = vshll.u32 %v902, %v909
        %v912 = vshrl.u32 %v894, %v910
        %v913 = vor.u32 %v911, %v912
        %v914 = vsub.s32 4294967266, %v909
        %v915 = vadd.s32 %v914, 127
        %v916 = vshll.u32 %v915, 23
        %v917 = vor.u32 4788187, %v916
        %v918 = vand.u32 2147483647, %v917
        %v920 = vcvt.s32.f32 %v913
        %v921 = vmul.f32 %v920, %v918
        %v922 = vxor.u32 %v921, 2147483648
        %v923 = vsel %vm840, %v922, %v921
        %v924 = vsub.s32 4, %v900
        %v925 = vsel %vm840, %v924, %v900
        %v926 = vsel %vm839, %v837, %v923
        %v927 = vsel %vm839, 0, %v925
        %v928 = vcosq.f32.pop %v926
        %v929 = vsinq.f32.pop %v926
        %vm930 = vweird.f32 %v837
        %v931 = vadd.s32 %v927, 3
        %v932 = vand.u32 %v931, 3
        %vm933 = vcmp.lt.s32.totalorder %v932, 2
        %vm934 = vcmp.eq.s32.totalorder %v932, 0
        %v935 = vxor.u32 %v929, 2147483648
        %v936 = vsel %vm934, %v928, %v935
        %vm937 = vcmp.eq.s32.totalorder %v932, 2
        %v938 = vxor.u32 %v928, 2147483648
        %v939 = vsel %vm937, %v938, %v929
        %v940 = vsel %vm933, %v936, %v939
        %v941 = vsel %vm930, nan, %v940
        %v942 = vmul.f32 %v941, %v941
        %v943 = vmul.f32 %v707, %v942
        %v944 = vadd.f32 %v836, %v943
        %p945 = scmp.lt.s32.totalorder %s24, 0
        %s946 = scalar_select %p945, 1, 0
        %v947 = vstv %s946
        %vm948 = vcmp.eq.s32.totalorder %v947, 1
        %v949 = vsel %vm948, %v944, 0.0
        %vm950 = vcmask 68608
        %951 = vst.msk [vmem:[#allocation2 + $0x10] sm:$0xf] %vm950, %v949
        %v952 = vld [vmem:[%s1] sm:$0xf]
        %v953 = vld [vmem:[#allocation2] ss:$4 sm:$0x1f]
        %955 = vset.pattern.permute.xlu0 0
        %956 = vperm.xlu0 %955, %v952
        %v957 = vpop.permute.xlu0 %956
        %v960 = vlaneseq
        %v961 = vshrl.u32 %v960, 7
        %v962 = vsub.s32 0, %v961
        %v963 = vrot.slane %v953, %v962
        %v964 = vlaneseq
        %v965 = vshrl.u32 %v964, 7
        %v966 = vsub.s32 1, %v965
        %v967 = vrot.slane %v953, %v966
        %v968 = vlaneseq
        %v969 = vshrl.u32 %v968, 7
        %v970 = vsub.s32 2, %v969
        %v971 = vrot.slane %v953, %v970
        %v972 = vlaneseq
        %v973 = vshrl.u32 %v972, 7
        %v974 = vsub.s32 3, %v973
        %v975 = vrot.slane %v953, %v974
        %v976 = vlaneseq
        %v977 = vshrl.u32 %v976, 7
        %v978 = vsub.s32 4, %v977
        %v979 = vrot.slane %v953, %v978
        %v985 = vmul.f32 %v957, %v963
        %v986 = vmul.f32 %v957, %v967
        %v987 = vmul.f32 %v957, %v971
        %v988 = vmul.f32 %v957, %v975
        %v989 = vmul.f32 %v957, %v979
        %s990 = scalar_lea.vmem [#allocation2], 1
        %v991 = vld [vmem:[%s990] ss:$4 sm:$0x1f]
        %992 = vset.pattern.permute.xlu0 1
        %993 = vperm.xlu0 %992, %v952
        %v994 = vpop.permute.xlu0 %993
        %v997 = vlaneseq
        %v998 = vshrl.u32 %v997, 7
        %v999 = vsub.s32 0, %v998
        %v1000 = vrot.slane %v991, %v999
        %v1001 = vlaneseq
        %v1002 = vshrl.u32 %v1001, 7
        %v1003 = vsub.s32 1, %v1002
        %v1004 = vrot.slane %v991, %v1003
        %v1005 = vlaneseq
        %v1006 = vshrl.u32 %v1005, 7
        %v1007 = vsub.s32 2, %v1006
        %v1008 = vrot.slane %v991, %v1007
        %v1009 = vlaneseq
        %v1010 = vshrl.u32 %v1009, 7
        %v1011 = vsub.s32 3, %v1010
        %v1012 = vrot.slane %v991, %v1011
        %v1013 = vlaneseq
        %v1014 = vshrl.u32 %v1013, 7
        %v1015 = vsub.s32 4, %v1014
        %v1016 = vrot.slane %v991, %v1015
        %v1022 = vmul.f32 %v994, %v1000
        %v1023 = vmul.f32 %v994, %v1004
        %v1024 = vmul.f32 %v994, %v1008
        %v1025 = vmul.f32 %v994, %v1012
        %v1026 = vmul.f32 %v994, %v1016
        %v1027 = vadd.f32 %v985, %v1022
        %v1028 = vadd.f32 %v986, %v1023
        %v1029 = vadd.f32 %v987, %v1024
        %v1030 = vadd.f32 %v988, %v1025
        %v1031 = vadd.f32 %v989, %v1026
        %s1032 = scalar_lea.vmem [#allocation2], 2
        %v1033 = vld [vmem:[%s1032] ss:$4 sm:$0x1f]
        %1034 = vset.pattern.permute.xlu0 2
        %1035 = vperm.xlu0 %1034, %v952
        %v1036 = vpop.permute.xlu0 %1035
        %v1039 = vlaneseq
        %v1040 = vshrl.u32 %v1039, 7
        %v1041 = vsub.s32 0, %v1040
        %v1042 = vrot.slane %v1033, %v1041
        %v1043 = vlaneseq
        %v1044 = vshrl.u32 %v1043, 7
        %v1045 = vsub.s32 1, %v1044
        %v1046 = vrot.slane %v1033, %v1045
        %v1047 = vlaneseq
        %v1048 = vshrl.u32 %v1047, 7
        %v1049 = vsub.s32 2, %v1048
        %v1050 = vrot.slane %v1033, %v1049
        %v1051 = vlaneseq
        %v1052 = vshrl.u32 %v1051, 7
        %v1053 = vsub.s32 3, %v1052
        %v1054 = vrot.slane %v1033, %v1053
        %v1055 = vlaneseq
        %v1056 = vshrl.u32 %v1055, 7
        %v1057 = vsub.s32 4, %v1056
        %v1058 = vrot.slane %v1033, %v1057
        %v1064 = vmul.f32 %v1036, %v1042
        %v1065 = vmul.f32 %v1036, %v1046
        %v1066 = vmul.f32 %v1036, %v1050
        %v1067 = vmul.f32 %v1036, %v1054
        %v1068 = vmul.f32 %v1036, %v1058
        %v1069 = vadd.f32 %v1027, %v1064
        %v1070 = vadd.f32 %v1028, %v1065
        %v1071 = vadd.f32 %v1029, %v1066
        %v1072 = vadd.f32 %v1030, %v1067
        %v1073 = vadd.f32 %v1031, %v1068
        %s1074 = scalar_lea.vmem [#allocation2], 3
        %v1075 = vld [vmem:[%s1074] ss:$4 sm:$0x1f]
        %1076 = vset.pattern.permute.xlu0 3
        %1077 = vperm.xlu0 %1076, %v952
        %v1078 = vpop.permute.xlu0 %1077
        %v1081 = vlaneseq
        %v1082 = vshrl.u32 %v1081, 7
        %v1083 = vsub.s32 0, %v1082
        %v1084 = vrot.slane %v1075, %v1083
        %v1085 = vlaneseq
        %v1086 = vshrl.u32 %v1085, 7
        %v1087 = vsub.s32 1, %v1086
        %v1088 = vrot.slane %v1075, %v1087
        %v1089 = vlaneseq
        %v1090 = vshrl.u32 %v1089, 7
        %v1091 = vsub.s32 2, %v1090
        %v1092 = vrot.slane %v1075, %v1091
        %v1093 = vlaneseq
        %v1094 = vshrl.u32 %v1093, 7
        %v1095 = vsub.s32 3, %v1094
        %v1096 = vrot.slane %v1075, %v1095
        %v1097 = vlaneseq
        %v1098 = vshrl.u32 %v1097, 7
        %v1099 = vsub.s32 4, %v1098
        %v1100 = vrot.slane %v1075, %v1099
        %v1106 = vmul.f32 %v1078, %v1084
        %v1107 = vmul.f32 %v1078, %v1088
        %v1108 = vmul.f32 %v1078, %v1092
        %v1109 = vmul.f32 %v1078, %v1096
        %v1110 = vmul.f32 %v1078, %v1100
        %v1111 = vadd.f32 %v1069, %v1106
        %v1112 = vadd.f32 %v1070, %v1107
        %v1113 = vadd.f32 %v1071, %v1108
        %v1114 = vadd.f32 %v1072, %v1109
        %v1115 = vadd.f32 %v1073, %v1110
        %s1116 = scalar_lea.vmem %s1, 4
        %v1117 = vld [vmem:[%s1116] sm:$0xf]
        %1119 = vset.pattern.permute.xlu0 0
        %1120 = vperm.xlu0 %1119, %v1117
        %v1121 = vpop.permute.xlu0 %1120
        %v1123 = vmul.f32 %v1121, %v963
        %v1124 = vmul.f32 %v1121, %v967
        %v1125 = vmul.f32 %v1121, %v971
        %v1126 = vmul.f32 %v1121, %v975
        %v1127 = vmul.f32 %v1121, %v979
        %1128 = vset.pattern.permute.xlu0 1
        %1129 = vperm.xlu0 %1128, %v1117
        %v1130 = vpop.permute.xlu0 %1129
        %v1132 = vmul.f32 %v1130, %v1000
        %v1133 = vmul.f32 %v1130, %v1004
        %v1134 = vmul.f32 %v1130, %v1008
        %v1135 = vmul.f32 %v1130, %v1012
        %v1136 = vmul.f32 %v1130, %v1016
        %v1137 = vadd.f32 %v1123, %v1132
        %v1138 = vadd.f32 %v1124, %v1133
        %v1139 = vadd.f32 %v1125, %v1134
        %v1140 = vadd.f32 %v1126, %v1135
        %v1141 = vadd.f32 %v1127, %v1136
        %1142 = vset.pattern.permute.xlu0 2
        %1143 = vperm.xlu0 %1142, %v1117
        %v1144 = vpop.permute.xlu0 %1143
        %v1146 = vmul.f32 %v1144, %v1042
        %v1147 = vmul.f32 %v1144, %v1046
        %v1148 = vmul.f32 %v1144, %v1050
        %v1149 = vmul.f32 %v1144, %v1054
        %v1150 = vmul.f32 %v1144, %v1058
        %v1151 = vadd.f32 %v1137, %v1146
        %v1152 = vadd.f32 %v1138, %v1147
        %v1153 = vadd.f32 %v1139, %v1148
        %v1154 = vadd.f32 %v1140, %v1149
        %v1155 = vadd.f32 %v1141, %v1150
        %1156 = vset.pattern.permute.xlu0 3
        %1157 = vperm.xlu0 %1156, %v1117
        %v1158 = vpop.permute.xlu0 %1157
        %v1160 = vmul.f32 %v1158, %v1084
        %v1161 = vmul.f32 %v1158, %v1088
        %v1162 = vmul.f32 %v1158, %v1092
        %v1163 = vmul.f32 %v1158, %v1096
        %v1164 = vmul.f32 %v1158, %v1100
        %v1165 = vadd.f32 %v1151, %v1160
        %v1166 = vadd.f32 %v1152, %v1161
        %v1167 = vadd.f32 %v1153, %v1162
        %v1168 = vadd.f32 %v1154, %v1163
        %v1169 = vadd.f32 %v1155, %v1164
        %1175 = vrot.lane.b32.xlu0 %v1165, 127
        %v1176 = vpop.permute.xlu0 %1175
        %1177 = vrot.lane.b32.xlu0 %v1166, 127
        %v1178 = vpop.permute.xlu0 %1177
        %1179 = vrot.lane.b32.xlu0 %v1167, 127
        %v1180 = vpop.permute.xlu0 %1179
        %1181 = vrot.lane.b32.xlu0 %v1168, 127
        %v1182 = vpop.permute.xlu0 %1181
        %1183 = vrot.lane.b32.xlu0 %v1169, 127
        %v1184 = vpop.permute.xlu0 %1183
        %vm1185 = vcmask 1039360
        %v1186 = vsel %vm1185, %v1176, %v1178
        %v1187 = vsel %vm1185, %v1178, %v1180
        %v1188 = vsel %vm1185, %v1180, %v1182
        %v1189 = vsel %vm1185, %v1182, %v1184
        %v1195 = vadd.f32 %v1111, %v1186
        %v1196 = vadd.f32 %v1112, %v1187
        %v1197 = vadd.f32 %v1113, %v1188
        %v1198 = vadd.f32 %v1114, %v1189
        %v1199 = vadd.f32 %v1115, %v1184
        %s1200 = scalar_lea.vmem %s1, 8
        %v1201 = vld [vmem:[%s1200] sm:$0xf]
        %1203 = vset.pattern.permute.xlu0 0
        %1204 = vperm.xlu0 %1203, %v1201
        %v1205 = vpop.permute.xlu0 %1204
        %v1207 = vmul.f32 %v1205, %v963
        %v1208 = vmul.f32 %v1205, %v967
        %v1209 = vmul.f32 %v1205, %v971
        %v1210 = vmul.f32 %v1205, %v975
        %v1211 = vmul.f32 %v1205, %v979
        %1212 = vset.pattern.permute.xlu0 1
        %1213 = vperm.xlu0 %1212, %v1201
        %v1214 = vpop.permute.xlu0 %1213
        %v1216 = vmul.f32 %v1214, %v1000
        %v1217 = vmul.f32 %v1214, %v1004
        %v1218 = vmul.f32 %v1214, %v1008
        %v1219 = vmul.f32 %v1214, %v1012
        %v1220 = vmul.f32 %v1214, %v1016
        %v1221 = vadd.f32 %v1207, %v1216
        %v1222 = vadd.f32 %v1208, %v1217
        %v1223 = vadd.f32 %v1209, %v1218
        %v1224 = vadd.f32 %v1210, %v1219
        %v1225 = vadd.f32 %v1211, %v1220
        %1226 = vset.pattern.permute.xlu0 2
        %1227 = vperm.xlu0 %1226, %v1201
        %v1228 = vpop.permute.xlu0 %1227
        %v1230 = vmul.f32 %v1228, %v1042
        %v1231 = vmul.f32 %v1228, %v1046
        %v1232 = vmul.f32 %v1228, %v1050
        %v1233 = vmul.f32 %v1228, %v1054
        %v1234 = vmul.f32 %v1228, %v1058
        %v1235 = vadd.f32 %v1221, %v1230
        %v1236 = vadd.f32 %v1222, %v1231
        %v1237 = vadd.f32 %v1223, %v1232
        %v1238 = vadd.f32 %v1224, %v1233
        %v1239 = vadd.f32 %v1225, %v1234
        %1240 = vset.pattern.permute.xlu0 3
        %1241 = vperm.xlu0 %1240, %v1201
        %v1242 = vpop.permute.xlu0 %1241
        %v1244 = vmul.f32 %v1242, %v1084
        %v1245 = vmul.f32 %v1242, %v1088
        %v1246 = vmul.f32 %v1242, %v1092
        %v1247 = vmul.f32 %v1242, %v1096
        %v1248 = vmul.f32 %v1242, %v1100
        %v1249 = vadd.f32 %v1235, %v1244
        %v1250 = vadd.f32 %v1236, %v1245
        %v1251 = vadd.f32 %v1237, %v1246
        %v1252 = vadd.f32 %v1238, %v1247
        %v1253 = vadd.f32 %v1239, %v1248
        %1259 = vrot.lane.b32.xlu0 %v1249, 126
        %v1260 = vpop.permute.xlu0 %1259
        %1261 = vrot.lane.b32.xlu0 %v1250, 126
        %v1262 = vpop.permute.xlu0 %1261
        %1263 = vrot.lane.b32.xlu0 %v1251, 126
        %v1264 = vpop.permute.xlu0 %1263
        %1265 = vrot.lane.b32.xlu0 %v1252, 126
        %v1266 = vpop.permute.xlu0 %1265
        %1267 = vrot.lane.b32.xlu0 %v1253, 126
        %v1268 = vpop.permute.xlu0 %1267
        %vm1269 = vcmask 1031168
        %v1270 = vsel %vm1269, %v1260, %v1262
        %v1271 = vsel %vm1269, %v1262, %v1264
        %v1272 = vsel %vm1269, %v1264, %v1266
        %v1273 = vsel %vm1269, %v1266, %v1268
        %v1279 = vadd.f32 %v1195, %v1270
        %v1280 = vadd.f32 %v1196, %v1271
        %v1281 = vadd.f32 %v1197, %v1272
        %v1282 = vadd.f32 %v1198, %v1273
        %v1283 = vadd.f32 %v1199, %v1268
        %v1284 = vld [vmem:[#allocation2] sm:$0xff]
        %v1285 = vld [vmem:[#allocation2 + $0x8] sm:$0xff]
        %v1286 = vld [vmem:[#allocation2 + $0x10] sm:$0xf]
        %v1292 = vcombine.low %v1279, %v1280
        %v1293 = vcombine.low %v1281, %v1282
        %1294 = vrot.lane.b32.xlu0 %v1292, 1
        %v1295 = vpop.permute.xlu0 %1294
        %1296 = vrot.lane.b32.xlu0 %v1293, 1
        %v1297 = vpop.permute.xlu0 %1296
        %1298 = vrot.lane.b32.xlu0 %v1283, 1
        %v1299 = vpop.permute.xlu0 %1298
        %v1300 = vrot.slane %v1295, 4
        %v1301 = vrot.slane %v1297, 4
        %vm1302 = vcmask 7168
        %v1303 = vsel %vm1302, %v1300, %v1295
        %vm1304 = vcmask 1043456
        %v1305 = vsel %vm1304, %v1300, %v1301
        %v1306 = vsel %vm1302, %v1305, %v1297
        %v1307 = vsel %vm1302, %v1301, %v1299
        %v1311 = vadd.f32 %v1284, %v1303
        %v1312 = vadd.f32 %v1285, %v1306
        %v1313 = vadd.f32 %v1286, %v1307
        %vm1314 = vcmask 1044416
        %vm1315 = vcmask 1047556
        %vm1316 = vmor %vm1315, %vm1314
        %1317 = vst.msk [vmem:[#allocation2] sm:$0xff] %vm1316, %v1311
        %1318 = vst [vmem:[#allocation2 + $0x8] sm:$0xff] %v1312
        %vm1319 = vcmask 60416
        %1320 = vst.msk [vmem:[#allocation2 + $0x10] sm:$0xf] %vm1319, %v1313
        %p1321 = scmp.eq.s32.totalorder %s24, 0
        // Predicated region
        $region41: #{tpu_custom_call.1} parent=39 // pred_check
          %p1322 = pneg %p1321
        $region42: #{tpu_custom_call.1} parent=39 // pred_check_branch
          %1324 = sbr.rel (%p1322) target = $region44
        $region43: #{tpu_custom_call.1} parent=39 // pred_region
          %1325 = vst.msk [vmem:[#allocation2] sm:$0xf] %vm834, 0.0
          %1326 = vst.msk [vmem:[#allocation2 + $0x10] sm:$0xf] %vm950, 0.0
        $region44: #{tpu_custom_call.1} parent=39 // pred_fallthru
          _
        %s1327 = scalar_lea.vmem %s1, 12
        %v1328 = vld [vmem:[%s1327] sm:$0xf]
        %v1329 = vld [vmem:[#allocation2] ss:$4 sm:$0x1f]
        %1331 = vset.pattern.permute.xlu0 0
        %1332 = vperm.xlu0 %1331, %v1328
        %v1333 = vpop.permute.xlu0 %1332
        %v1336 = vlaneseq
        %v1337 = vshrl.u32 %v1336, 7
        %v1338 = vsub.s32 0, %v1337
        %v1339 = vrot.slane %v1329, %v1338
        %v1340 = vlaneseq
        %v1341 = vshrl.u32 %v1340, 7
        %v1342 = vsub.s32 1, %v1341
        %v1343 = vrot.slane %v1329, %v1342
        %v1344 = vlaneseq
        %v1345 = vshrl.u32 %v1344, 7
        %v1346 = vsub.s32 2, %v1345
        %v1347 = vrot.slane %v1329, %v1346
        %v1348 = vlaneseq
        %v1349 = vshrl.u32 %v1348, 7
        %v1350 = vsub.s32 3, %v1349
        %v1351 = vrot.slane %v1329, %v1350
        %v1352 = vlaneseq
        %v1353 = vshrl.u32 %v1352, 7
        %v1354 = vsub.s32 4, %v1353
        %v1355 = vrot.slane %v1329, %v1354
        %v1361 = vmul.f32 %v1333, %v1339
        %v1362 = vmul.f32 %v1333, %v1343
        %v1363 = vmul.f32 %v1333, %v1347
        %v1364 = vmul.f32 %v1333, %v1351
        %v1365 = vmul.f32 %v1333, %v1355
        %v1366 = vld [vmem:[%s990] ss:$4 sm:$0x1f]
        %1367 = vset.pattern.permute.xlu0 1
        %1368 = vperm.xlu0 %1367, %v1328
        %v1369 = vpop.permute.xlu0 %1368
        %v1372 = vlaneseq
        %v1373 = vshrl.u32 %v1372, 7
        %v1374 = vsub.s32 0, %v1373
        %v1375 = vrot.slane %v1366, %v1374
        %v1376 = vlaneseq
        %v1377 = vshrl.u32 %v1376, 7
        %v1378 = vsub.s32 1, %v1377
        %v1379 = vrot.slane %v1366, %v1378
        %v1380 = vlaneseq
        %v1381 = vshrl.u32 %v1380, 7
        %v1382 = vsub.s32 2, %v1381
        %v1383 = vrot.slane %v1366, %v1382
        %v1384 = vlaneseq
        %v1385 = vshrl.u32 %v1384, 7
        %v1386 = vsub.s32 3, %v1385
        %v1387 = vrot.slane %v1366, %v1386
        %v1388 = vlaneseq
        %v1389 = vshrl.u32 %v1388, 7
        %v1390 = vsub.s32 4, %v1389
        %v1391 = vrot.slane %v1366, %v1390
        %v1397 = vmul.f32 %v1369, %v1375
        %v1398 = vmul.f32 %v1369, %v1379
        %v1399 = vmul.f32 %v1369, %v1383
        %v1400 = vmul.f32 %v1369, %v1387
        %v1401 = vmul.f32 %v1369, %v1391
        %v1402 = vadd.f32 %v1361, %v1397
        %v1403 = vadd.f32 %v1362, %v1398
        %v1404 = vadd.f32 %v1363, %v1399
        %v1405 = vadd.f32 %v1364, %v1400
        %v1406 = vadd.f32 %v1365, %v1401
        %v1407 = vld [vmem:[%s1032] ss:$4 sm:$0x1f]
        %1408 = vset.pattern.permute.xlu0 2
        %1409 = vperm.xlu0 %1408, %v1328
        %v1410 = vpop.permute.xlu0 %1409
        %v1413 = vlaneseq
        %v1414 = vshrl.u32 %v1413, 7
        %v1415 = vsub.s32 0, %v1414
        %v1416 = vrot.slane %v1407, %v1415
        %v1417 = vlaneseq
        %v1418 = vshrl.u32 %v1417, 7
        %v1419 = vsub.s32 1, %v1418
        %v1420 = vrot.slane %v1407, %v1419
        %v1421 = vlaneseq
        %v1422 = vshrl.u32 %v1421, 7
        %v1423 = vsub.s32 2, %v1422
        %v1424 = vrot.slane %v1407, %v1423
        %v1425 = vlaneseq
        %v1426 = vshrl.u32 %v1425, 7
        %v1427 = vsub.s32 3, %v1426
        %v1428 = vrot.slane %v1407, %v1427
        %v1429 = vlaneseq
        %v1430 = vshrl.u32 %v1429, 7
        %v1431 = vsub.s32 4, %v1430
        %v1432 = vrot.slane %v1407, %v1431
        %v1438 = vmul.f32 %v1410, %v1416
        %v1439 = vmul.f32 %v1410, %v1420
        %v1440 = vmul.f32 %v1410, %v1424
        %v1441 = vmul.f32 %v1410, %v1428
        %v1442 = vmul.f32 %v1410, %v1432
        %v1443 = vadd.f32 %v1402, %v1438
        %v1444 = vadd.f32 %v1403, %v1439
        %v1445 = vadd.f32 %v1404, %v1440
        %v1446 = vadd.f32 %v1405, %v1441
        %v1447 = vadd.f32 %v1406, %v1442
        %v1448 = vld [vmem:[%s1074] ss:$4 sm:$0x1f]
        %1449 = vset.pattern.permute.xlu0 3
        %1450 = vperm.xlu0 %1449, %v1328
        %v1451 = vpop.permute.xlu0 %1450
        %v1454 = vlaneseq
        %v1455 = vshrl.u32 %v1454, 7
        %v1456 = vsub.s32 0, %v1455
        %v1457 = vrot.slane %v1448, %v1456
        %v1458 = vlaneseq
        %v1459 = vshrl.u32 %v1458, 7
        %v1460 = vsub.s32 1, %v1459
        %v1461 = vrot.slane %v1448, %v1460
        %v1462 = vlaneseq
        %v1463 = vshrl.u32 %v1462, 7
        %v1464 = vsub.s32 2, %v1463
        %v1465 = vrot.slane %v1448, %v1464
        %v1466 = vlaneseq
        %v1467 = vshrl.u32 %v1466, 7
        %v1468 = vsub.s32 3, %v1467
        %v1469 = vrot.slane %v1448, %v1468
        %v1470 = vlaneseq
        %v1471 = vshrl.u32 %v1470, 7
        %v1472 = vsub.s32 4, %v1471
        %v1473 = vrot.slane %v1448, %v1472
        %v1479 = vmul.f32 %v1451, %v1457
        %v1480 = vmul.f32 %v1451, %v1461
        %v1481 = vmul.f32 %v1451, %v1465
        %v1482 = vmul.f32 %v1451, %v1469
        %v1483 = vmul.f32 %v1451, %v1473
        %v1484 = vadd.f32 %v1443, %v1479
        %v1485 = vadd.f32 %v1444, %v1480
        %v1486 = vadd.f32 %v1445, %v1481
        %v1487 = vadd.f32 %v1446, %v1482
        %v1488 = vadd.f32 %v1447, %v1483
        %s1489 = scalar_lea.vmem %s1, 16
        %v1490 = vld [vmem:[%s1489] sm:$0xf]
        %1492 = vset.pattern.permute.xlu0 0
        %1493 = vperm.xlu0 %1492, %v1490
        %v1494 = vpop.permute.xlu0 %1493
        %v1496 = vmul.f32 %v1494, %v1339
        %v1497 = vmul.f32 %v1494, %v1343
        %v1498 = vmul.f32 %v1494, %v1347
        %v1499 = vmul.f32 %v1494, %v1351
        %v1500 = vmul.f32 %v1494, %v1355
        %1501 = vset.pattern.permute.xlu0 1
        %1502 = vperm.xlu0 %1501, %v1490
        %v1503 = vpop.permute.xlu0 %1502
        %v1505 = vmul.f32 %v1503, %v1375
        %v1506 = vmul.f32 %v1503, %v1379
        %v1507 = vmul.f32 %v1503, %v1383
        %v1508 = vmul.f32 %v1503, %v1387
        %v1509 = vmul.f32 %v1503, %v1391
        %v1510 = vadd.f32 %v1496, %v1505
        %v1511 = vadd.f32 %v1497, %v1506
        %v1512 = vadd.f32 %v1498, %v1507
        %v1513 = vadd.f32 %v1499, %v1508
        %v1514 = vadd.f32 %v1500, %v1509
        %1515 = vset.pattern.permute.xlu0 2
        %1516 = vperm.xlu0 %1515, %v1490
        %v1517 = vpop.permute.xlu0 %1516
        %v1519 = vmul.f32 %v1517, %v1416
        %v1520 = vmul.f32 %v1517, %v1420
        %v1521 = vmul.f32 %v1517, %v1424
        %v1522 = vmul.f32 %v1517, %v1428
        %v1523 = vmul.f32 %v1517, %v1432
        %v1524 = vadd.f32 %v1510, %v1519
        %v1525 = vadd.f32 %v1511, %v1520
        %v1526 = vadd.f32 %v1512, %v1521
        %v1527 = vadd.f32 %v1513, %v1522
        %v1528 = vadd.f32 %v1514, %v1523
        %1529 = vset.pattern.permute.xlu0 3
        %1530 = vperm.xlu0 %1529, %v1490
        %v1531 = vpop.permute.xlu0 %1530
        %v1533 = vmul.f32 %v1531, %v1457
        %v1534 = vmul.f32 %v1531, %v1461
        %v1535 = vmul.f32 %v1531, %v1465
        %v1536 = vmul.f32 %v1531, %v1469
        %v1537 = vmul.f32 %v1531, %v1473
        %v1538 = vadd.f32 %v1524, %v1533
        %v1539 = vadd.f32 %v1525, %v1534
        %v1540 = vadd.f32 %v1526, %v1535
        %v1541 = vadd.f32 %v1527, %v1536
        %v1542 = vadd.f32 %v1528, %v1537
        %1548 = vrot.lane.b32.xlu0 %v1538, 125
        %v1549 = vpop.permute.xlu0 %1548
        %1550 = vrot.lane.b32.xlu0 %v1539, 125
        %v1551 = vpop.permute.xlu0 %1550
        %1552 = vrot.lane.b32.xlu0 %v1540, 125
        %v1553 = vpop.permute.xlu0 %1552
        %1554 = vrot.lane.b32.xlu0 %v1541, 125
        %v1555 = vpop.permute.xlu0 %1554
        %1556 = vrot.lane.b32.xlu0 %v1542, 125
        %v1557 = vpop.permute.xlu0 %1556
        %vm1558 = vcmask 1022976
        %v1559 = vsel %vm1558, %v1549, %v1551
        %v1560 = vsel %vm1558, %v1551, %v1553
        %v1561 = vsel %vm1558, %v1553, %v1555
        %v1562 = vsel %vm1558, %v1555, %v1557
        %v1568 = vadd.f32 %v1484, %v1559
        %v1569 = vadd.f32 %v1485, %v1560
        %v1570 = vadd.f32 %v1486, %v1561
        %v1571 = vadd.f32 %v1487, %v1562
        %v1572 = vadd.f32 %v1488, %v1557
        %s1573 = scalar_lea.vmem %s1, 20
        %v1574 = vld [vmem:[%s1573] sm:$0xf]
        %1576 = vset.pattern.permute.xlu0 0
        %1577 = vperm.xlu0 %1576, %v1574
        %v1578 = vpop.permute.xlu0 %1577
        %v1580 = vmul.f32 %v1578, %v1339
        %v1581 = vmul.f32 %v1578, %v1343
        %v1582 = vmul.f32 %v1578, %v1347
        %v1583 = vmul.f32 %v1578, %v1351
        %v1584 = vmul.f32 %v1578, %v1355
        %1585 = vset.pattern.permute.xlu0 1
        %1586 = vperm.xlu0 %1585, %v1574
        %v1587 = vpop.permute.xlu0 %1586
        %v1589 = vmul.f32 %v1587, %v1375
        %v1590 = vmul.f32 %v1587, %v1379
        %v1591 = vmul.f32 %v1587, %v1383
        %v1592 = vmul.f32 %v1587, %v1387
        %v1593 = vmul.f32 %v1587, %v1391
        %v1594 = vadd.f32 %v1580, %v1589
        %v1595 = vadd.f32 %v1581, %v1590
        %v1596 = vadd.f32 %v1582, %v1591
        %v1597 = vadd.f32 %v1583, %v1592
        %v1598 = vadd.f32 %v1584, %v1593
        %1599 = vset.pattern.permute.xlu0 2
        %1600 = vperm.xlu0 %1599, %v1574
        %v1601 = vpop.permute.xlu0 %1600
        %v1603 = vmul.f32 %v1601, %v1416
        %v1604 = vmul.f32 %v1601, %v1420
        %v1605 = vmul.f32 %v1601, %v1424
        %v1606 = vmul.f32 %v1601, %v1428
        %v1607 = vmul.f32 %v1601, %v1432
        %v1608 = vadd.f32 %v1594, %v1603
        %v1609 = vadd.f32 %v1595, %v1604
        %v1610 = vadd.f32 %v1596, %v1605
        %v1611 = vadd.f32 %v1597, %v1606
        %v1612 = vadd.f32 %v1598, %v1607
        %1613 = vset.pattern.permute.xlu0 3
        %1614 = vperm.xlu0 %1613, %v1574
        %v1615 = vpop.permute.xlu0 %1614
        %v1617 = vmul.f32 %v1615, %v1457
        %v1618 = vmul.f32 %v1615, %v1461
        %v1619 = vmul.f32 %v1615, %v1465
        %v1620 = vmul.f32 %v1615, %v1469
        %v1621 = vmul.f32 %v1615, %v1473
        %v1622 = vadd.f32 %v1608, %v1617
        %v1623 = vadd.f32 %v1609, %v1618
        %v1624 = vadd.f32 %v1610, %v1619
        %v1625 = vadd.f32 %v1611, %v1620
        %v1626 = vadd.f32 %v1612, %v1621
        %1632 = vrot.lane.b32.xlu0 %v1622, 122
        %v1633 = vpop.permute.xlu0 %1632
        %1634 = vrot.lane.b32.xlu0 %v1623, 122
        %v1635 = vpop.permute.xlu0 %1634
        %1636 = vrot.lane.b32.xlu0 %v1624, 122
        %v1637 = vpop.permute.xlu0 %1636
        %1638 = vrot.lane.b32.xlu0 %v1625, 122
        %v1639 = vpop.permute.xlu0 %1638
        %1640 = vrot.lane.b32.xlu0 %v1626, 122
        %v1641 = vpop.permute.xlu0 %1640
        %vm1642 = vcmask 998400
        %v1643 = vsel %vm1642, %v1633, %v1635
        %v1644 = vsel %vm1642, %v1635, %v1637
        %v1645 = vsel %vm1642, %v1637, %v1639
        %v1646 = vsel %vm1642, %v1639, %v1641
        %v1652 = vadd.f32 %v1568, %v1643
        %v1653 = vadd.f32 %v1569, %v1644
        %v1654 = vadd.f32 %v1570, %v1645
        %v1655 = vadd.f32 %v1571, %v1646
        %v1656 = vadd.f32 %v1572, %v1641
        %v1657 = vld [vmem:[#allocation2] sm:$0xff]
        %v1658 = vld [vmem:[#allocation2 + $0x8] sm:$0xff]
        %v1659 = vld [vmem:[#allocation2 + $0x10] sm:$0xf]
        %v1665 = vcombine.low %v1652, %v1653
        %v1666 = vcombine.low %v1654, %v1655
        %1667 = vrot.lane.b32.xlu0 %v1665, 3
        %v1668 = vpop.permute.xlu0 %1667
        %1669 = vrot.lane.b32.xlu0 %v1666, 3
        %v1670 = vpop.permute.xlu0 %1669
        %1671 = vrot.lane.b32.xlu0 %v1656, 3
        %v1672 = vpop.permute.xlu0 %1671
        %v1673 = vrot.slane %v1668, 4
        %v1674 = vrot.slane %v1670, 4
        %vm1675 = vcmask 23552
        %v1676 = vsel %vm1675, %v1673, %v1668
        %v1677 = vsel %vm1304, %v1673, %v1674
        %v1678 = vsel %vm1675, %v1677, %v1670
        %v1679 = vsel %vm1675, %v1674, %v1672
        %v1683 = vadd.f32 %v1657, %v1676
        %v1684 = vadd.f32 %v1658, %v1678
        %v1685 = vadd.f32 %v1659, %v1679
        %vm1686 = vcmask 1044440
        %vm1687 = vmor %vm1315, %vm1686
        %1688 = vst.msk [vmem:[#allocation2] sm:$0xff] %vm1687, %v1683
        %1689 = vst [vmem:[#allocation2 + $0x8] sm:$0xff] %v1684
        %vm1690 = vcmask 35840
        %1691 = vst.msk [vmem:[#allocation2 + $0x10] sm:$0xf] %vm1690, %v1685
        // Predicated region
        $region45: #{tpu_custom_call.1} parent=39 // pred_check
          %p1692 = pneg %p1321
        $region46: #{tpu_custom_call.1} parent=39 // pred_check_branch
          %1694 = sbr.rel (%p1692) target = $region48
        $region47: #{tpu_custom_call.1} parent=39 // pred_region
          %1695 = vst.msk [vmem:[#allocation2] sm:$0xf] %vm834, 0.0
          %1696 = vst.msk [vmem:[#allocation2 + $0x10] sm:$0xf] %vm950, 0.0
        $region48: #{tpu_custom_call.1} parent=39 // pred_fallthru
          _
        %s1697 = scalar_lea.vmem %s1, 24
        %v1698 = vld [vmem:[%s1697] sm:$0xf]
        %v1699 = vld [vmem:[#allocation2] ss:$4 sm:$0xf]
        %1701 = vset.pattern.permute.xlu0 0
        %1702 = vperm.xlu0 %1701, %v1698
        %v1703 = vpop.permute.xlu0 %1702
        %v1706 = vlaneseq
        %v1707 = vshrl.u32 %v1706, 7
        %v1708 = vsub.s32 0, %v1707
        %v1709 = vrot.slane %v1699, %v1708
        %v1710 = vlaneseq
        %v1711 = vshrl.u32 %v1710, 7
        %v1712 = vsub.s32 1, %v1711
        %v1713 = vrot.slane %v1699, %v1712
        %v1714 = vlaneseq
        %v1715 = vshrl.u32 %v1714, 7
        %v1716 = vsub.s32 2, %v1715
        %v1717 = vrot.slane %v1699, %v1716
        %v1718 = vlaneseq
        %v1719 = vshrl.u32 %v1718, 7
        %v1720 = vsub.s32 3, %v1719
        %v1721 = vrot.slane %v1699, %v1720
        %v1726 = vmul.f32 %v1703, %v1709
        %v1727 = vmul.f32 %v1703, %v1713
        %v1728 = vmul.f32 %v1703, %v1717
        %v1729 = vmul.f32 %v1703, %v1721
        %s1730 = scalar_lea.vmem [#allocation2], 1
        %v1731 = vld [vmem:[%s1730] ss:$4 sm:$0xf]
        %1732 = vset.pattern.permute.xlu0 1
        %1733 = vperm.xlu0 %1732, %v1698
        %v1734 = vpop.permute.xlu0 %1733
        %v1737 = vlaneseq
        %v1738 = vshrl.u32 %v1737, 7
        %v1739 = vsub.s32 0, %v1738
        %v1740 = vrot.slane %v1731, %v1739
        %v1741 = vlaneseq
        %v1742 = vshrl.u32 %v1741, 7
        %v1743 = vsub.s32 1, %v1742
        %v1744 = vrot.slane %v1731, %v1743
        %v1745 = vlaneseq
        %v1746 = vshrl.u32 %v1745, 7
        %v1747 = vsub.s32 2, %v1746
        %v1748 = vrot.slane %v1731, %v1747
        %v1749 = vlaneseq
        %v1750 = vshrl.u32 %v1749, 7
        %v1751 = vsub.s32 3, %v1750
        %v1752 = vrot.slane %v1731, %v1751
        %v1757 = vmul.f32 %v1734, %v1740
        %v1758 = vmul.f32 %v1734, %v1744
        %v1759 = vmul.f32 %v1734, %v1748
        %v1760 = vmul.f32 %v1734, %v1752
        %v1761 = vadd.f32 %v1726, %v1757
        %v1762 = vadd.f32 %v1727, %v1758
        %v1763 = vadd.f32 %v1728, %v1759
        %v1764 = vadd.f32 %v1729, %v1760
        %s1765 = scalar_lea.vmem [#allocation2], 2
        %v1766 = vld [vmem:[%s1765] ss:$4 sm:$0xf]
        %1767 = vset.pattern.permute.xlu0 2
        %1768 = vperm.xlu0 %1767, %v1698
        %v1769 = vpop.permute.xlu0 %1768
        %v1772 = vlaneseq
        %v1773 = vshrl.u32 %v1772, 7
        %v1774 = vsub.s32 0, %v1773
        %v1775 = vrot.slane %v1766, %v1774
        %v1776 = vlaneseq
        %v1777 = vshrl.u32 %v1776, 7
        %v1778 = vsub.s32 1, %v1777
        %v1779 = vrot.slane %v1766, %v1778
        %v1780 = vlaneseq
        %v1781 = vshrl.u32 %v1780, 7
        %v1782 = vsub.s32 2, %v1781
        %v1783 = vrot.slane %v1766, %v1782
        %v1784 = vlaneseq
        %v1785 = vshrl.u32 %v1784, 7
        %v1786 = vsub.s32 3, %v1785
        %v1787 = vrot.slane %v1766, %v1786
        %v1792 = vmul.f32 %v1769, %v1775
        %v1793 = vmul.f32 %v1769, %v1779
        %v1794 = vmul.f32 %v1769, %v1783
        %v1795 = vmul.f32 %v1769, %v1787
        %v1796 = vadd.f32 %v1761, %v1792
        %v1797 = vadd.f32 %v1762, %v1793
        %v1798 = vadd.f32 %v1763, %v1794
        %v1799 = vadd.f32 %v1764, %v1795
        %s1800 = scalar_lea.vmem [#allocation2], 3
        %v1801 = vld [vmem:[%s1800] ss:$4 sm:$0xf]
        %1802 = vset.pattern.permute.xlu0 3
        %1803 = vperm.xlu0 %1802, %v1698
        %v1804 = vpop.permute.xlu0 %1803
        %v1807 = vlaneseq
        %v1808 = vshrl.u32 %v1807, 7
        %v1809 = vsub.s32 0, %v1808
        %v1810 = vrot.slane %v1801, %v1809
        %v1811 = vlaneseq
        %v1812 = vshrl.u32 %v1811, 7
        %v1813 = vsub.s32 1, %v1812
        %v1814 = vrot.slane %v1801, %v1813
        %v1815 = vlaneseq
        %v1816 = vshrl.u32 %v1815, 7
        %v1817 = vsub.s32 2, %v1816
        %v1818 = vrot.slane %v1801, %v1817
        %v1819 = vlaneseq
        %v1820 = vshrl.u32 %v1819, 7
        %v1821 = vsub.s32 3, %v1820
        %v1822 = vrot.slane %v1801, %v1821
        %v1827 = vmul.f32 %v1804, %v1810
        %v1828 = vmul.f32 %v1804, %v1814
        %v1829 = vmul.f32 %v1804, %v1818
        %v1830 = vmul.f32 %v1804, %v1822
        %v1831 = vadd.f32 %v1796, %v1827
        %v1832 = vadd.f32 %v1797, %v1828
        %v1833 = vadd.f32 %v1798, %v1829
        %v1834 = vadd.f32 %v1799, %v1830
        %s1835 = scalar_lea.vmem %s1, 28
        %v1836 = vld [vmem:[%s1835] sm:$0xf]
        %s1837 = scalar_lea.vmem [#allocation2], 4
        %v1838 = vld [vmem:[%s1837] ss:$4 sm:$0x7]
        %1840 = vset.pattern.permute.xlu0 0
        %1841 = vperm.xlu0 %1840, %v1836
        %v1842 = vpop.permute.xlu0 %1841
        %v1845 = vlaneseq
        %v1846 = vshrl.u32 %v1845, 7
        %v1847 = vsub.s32 0, %v1846
        %v1848 = vrot.slane %v1838, %v1847
        %v1849 = vlaneseq
        %v1850 = vshrl.u32 %v1849, 7
        %v1851 = vsub.s32 1, %v1850
        %v1852 = vrot.slane %v1838, %v1851
        %v1853 = vlaneseq
        %v1854 = vshrl.u32 %v1853, 7
        %v1855 = vsub.s32 2, %v1854
        %v1856 = vrot.slane %v1838, %v1855
        %v1860 = vmul.f32 %v1842, %v1848
        %v1861 = vmul.f32 %v1842, %v1852
        %v1862 = vmul.f32 %v1842, %v1856
        %s1863 = scalar_lea.vmem [#allocation2], 5
        %v1864 = vld [vmem:[%s1863] ss:$4 sm:$0x7]
        %1865 = vset.pattern.permute.xlu0 1
        %1866 = vperm.xlu0 %1865, %v1836
        %v1867 = vpop.permute.xlu0 %1866
        %v1870 = vlaneseq
        %v1871 = vshrl.u32 %v1870, 7
        %v1872 = vsub.s32 0, %v1871
        %v1873 = vrot.slane %v1864, %v1872
        %v1874 = vlaneseq
        %v1875 = vshrl.u32 %v1874, 7
        %v1876 = vsub.s32 1, %v1875
        %v1877 = vrot.slane %v1864, %v1876
        %v1878 = vlaneseq
        %v1879 = vshrl.u32 %v1878, 7
        %v1880 = vsub.s32 2, %v1879
        %v1881 = vrot.slane %v1864, %v1880
        %v1885 = vmul.f32 %v1867, %v1873
        %v1886 = vmul.f32 %v1867, %v1877
        %v1887 = vmul.f32 %v1867, %v1881
        %v1888 = vadd.f32 %v1860, %v1885
        %v1889 = vadd.f32 %v1861, %v1886
        %v1890 = vadd.f32 %v1862, %v1887
        %s1891 = scalar_lea.vmem [#allocation2], 6
        %v1892 = vld [vmem:[%s1891] ss:$4 sm:$0x7]
        %1893 = vset.pattern.permute.xlu0 2
        %1894 = vperm.xlu0 %1893, %v1836
        %v1895 = vpop.permute.xlu0 %1894
        %v1898 = vlaneseq
        %v1899 = vshrl.u32 %v1898, 7
        %v1900 = vsub.s32 0, %v1899
        %v1901 = vrot.slane %v1892, %v1900
        %v1902 = vlaneseq
        %v1903 = vshrl.u32 %v1902, 7
        %v1904 = vsub.s32 1, %v1903
        %v1905 = vrot.slane %v1892, %v1904
        %v1906 = vlaneseq
        %v1907 = vshrl.u32 %v1906, 7
        %v1908 = vsub.s32 2, %v1907
        %v1909 = vrot.slane %v1892, %v1908
        %v1913 = vmul.f32 %v1895, %v1901
        %v1914 = vmul.f32 %v1895, %v1905
        %v1915 = vmul.f32 %v1895, %v1909
        %v1916 = vadd.f32 %v1888, %v1913
        %v1917 = vadd.f32 %v1889, %v1914
        %v1918 = vadd.f32 %v1890, %v1915
        %s1919 = scalar_lea.vmem [#allocation2], 7
        %v1920 = vld [vmem:[%s1919] ss:$4 sm:$0x7]
        %1921 = vset.pattern.permute.xlu0 3
        %1922 = vperm.xlu0 %1921, %v1836
        %v1923 = vpop.permute.xlu0 %1922
        %v1926 = vlaneseq
        %v1927 = vshrl.u32 %v1926, 7
        %v1928 = vsub.s32 0, %v1927
        %v1929 = vrot.slane %v1920, %v1928
        %v1930 = vlaneseq
        %v1931 = vshrl.u32 %v1930, 7
        %v1932 = vsub.s32 1, %v1931
        %v1933 = vrot.slane %v1920, %v1932
        %v1934 = vlaneseq
        %v1935 = vshrl.u32 %v1934, 7
        %v1936 = vsub.s32 2, %v1935
        %v1937 = vrot.slane %v1920, %v1936
        %v1941 = vmul.f32 %v1923, %v1929
        %v1942 = vmul.f32 %v1923, %v1933
        %v1943 = vmul.f32 %v1923, %v1937
        %v1944 = vadd.f32 %v1916, %v1941
        %v1945 = vadd.f32 %v1917, %v1942
        %v1946 = vadd.f32 %v1918, %v1943
        %1950 = vrot.lane.b32.xlu0 %v1944, 123
        %v1951 = vpop.permute.xlu0 %1950
        %1952 = vrot.lane.b32.xlu0 %v1945, 123
        %v1953 = vpop.permute.xlu0 %1952
        %1954 = vrot.lane.b32.xlu0 %v1946, 123
        %v1955 = vpop.permute.xlu0 %1954
        %vm1956 = vcmask 1006592
        %v1957 = vsel %vm1956, %v1951, %v1953
        %v1958 = vsel %vm1956, %v1953, %v1955
        %v1963 = vadd.f32 %v1831, %v1951
        %v1964 = vadd.f32 %v1832, %v1957
        %v1965 = vadd.f32 %v1833, %v1958
        %v1966 = vadd.f32 %v1834, %v1955
        %s1967 = scalar_lea.vmem %s1, 32
        %v1968 = vld [vmem:[%s1967] sm:$0xf]
        %s1969 = scalar_lea.vmem [#allocation2], 4
        %v1970 = vld [vmem:[%s1969] ss:$4 sm:$0xf]
        %1972 = vset.pattern.permute.xlu0 0
        %1973 = vperm.xlu0 %1972, %v1968
        %v1974 = vpop.permute.xlu0 %1973
        %v1977 = vlaneseq
        %v1978 = vshrl.u32 %v1977, 7
        %v1979 = vsub.s32 0, %v1978
        %v1980 = vrot.slane %v1970, %v1979
        %v1981 = vlaneseq
        %v1982 = vshrl.u32 %v1981, 7
        %v1983 = vsub.s32 1, %v1982
        %v1984 = vrot.slane %v1970, %v1983
        %v1985 = vlaneseq
        %v1986 = vshrl.u32 %v1985, 7
        %v1987 = vsub.s32 2, %v1986
        %v1988 = vrot.slane %v1970, %v1987
        %v1989 = vlaneseq
        %v1990 = vshrl.u32 %v1989, 7
        %v1991 = vsub.s32 3, %v1990
        %v1992 = vrot.slane %v1970, %v1991
        %v1997 = vmul.f32 %v1974, %v1980
        %v1998 = vmul.f32 %v1974, %v1984
        %v1999 = vmul.f32 %v1974, %v1988
        %v2000 = vmul.f32 %v1974, %v1992
        %s2001 = scalar_lea.vmem [#allocation2], 5
        %v2002 = vld [vmem:[%s2001] ss:$4 sm:$0xf]
        %2003 = vset.pattern.permute.xlu0 1
        %2004 = vperm.xlu0 %2003, %v1968
        %v2005 = vpop.permute.xlu0 %2004
        %v2008 = vlaneseq
        %v2009 = vshrl.u32 %v2008, 7
        %v2010 = vsub.s32 0, %v2009
        %v2011 = vrot.slane %v2002, %v2010
        %v2012 = vlaneseq
        %v2013 = vshrl.u32 %v2012, 7
        %v2014 = vsub.s32 1, %v2013
        %v2015 = vrot.slane %v2002, %v2014
        %v2016 = vlaneseq
        %v2017 = vshrl.u32 %v2016, 7
        %v2018 = vsub.s32 2, %v2017
        %v2019 = vrot.slane %v2002, %v2018
        %v2020 = vlaneseq
        %v2021 = vshrl.u32 %v2020, 7
        %v2022 = vsub.s32 3, %v2021
        %v2023 = vrot.slane %v2002, %v2022
        %v2028 = vmul.f32 %v2005, %v2011
        %v2029 = vmul.f32 %v2005, %v2015
        %v2030 = vmul.f32 %v2005, %v2019
        %v2031 = vmul.f32 %v2005, %v2023
        %v2032 = vadd.f32 %v1997, %v2028
        %v2033 = vadd.f32 %v1998, %v2029
        %v2034 = vadd.f32 %v1999, %v2030
        %v2035 = vadd.f32 %v2000, %v2031
        %s2036 = scalar_lea.vmem [#allocation2], 6
        %v2037 = vld [vmem:[%s2036] ss:$4 sm:$0xf]
        %2038 = vset.pattern.permute.xlu0 2
        %2039 = vperm.xlu0 %2038, %v1968
        %v2040 = vpop.permute.xlu0 %2039
        %v2043 = vlaneseq
        %v2044 = vshrl.u32 %v2043, 7
        %v2045 = vsub.s32 0, %v2044
        %v2046 = vrot.slane %v2037, %v2045
        %v2047 = vlaneseq
        %v2048 = vshrl.u32 %v2047, 7
        %v2049 = vsub.s32 1, %v2048
        %v2050 = vrot.slane %v2037, %v2049
        %v2051 = vlaneseq
        %v2052 = vshrl.u32 %v2051, 7
        %v2053 = vsub.s32 2, %v2052
        %v2054 = vrot.slane %v2037, %v2053
        %v2055 = vlaneseq
        %v2056 = vshrl.u32 %v2055, 7
        %v2057 = vsub.s32 3, %v2056
        %v2058 = vrot.slane %v2037, %v2057
        %v2063 = vmul.f32 %v2040, %v2046
        %v2064 = vmul.f32 %v2040, %v2050
        %v2065 = vmul.f32 %v2040, %v2054
        %v2066 = vmul.f32 %v2040, %v2058
        %v2067 = vadd.f32 %v2032, %v2063
        %v2068 = vadd.f32 %v2033, %v2064
        %v2069 = vadd.f32 %v2034, %v2065
        %v2070 = vadd.f32 %v2035, %v2066
        %s2071 = scalar_lea.vmem [#allocation2], 7
        %v2072 = vld [vmem:[%s2071] ss:$4 sm:$0xf]
        %2073 = vset.pattern.permute.xlu0 3
        %2074 = vperm.xlu0 %2073, %v1968
        %v2075 = vpop.permute.xlu0 %2074
        %v2078 = vlaneseq
        %v2079 = vshrl.u32 %v2078, 7
        %v2080 = vsub.s32 0, %v2079
        %v2081 = vrot.slane %v2072, %v2080
        %v2082 = vlaneseq
        %v2083 = vshrl.u32 %v2082, 7
        %v2084 = vsub.s32 1, %v2083
        %v2085 = vrot.slane %v2072, %v2084
        %v2086 = vlaneseq
        %v2087 = vshrl.u32 %v2086, 7
        %v2088 = vsub.s32 2, %v2087
        %v2089 = vrot.slane %v2072, %v2088
        %v2090 = vlaneseq
        %v2091 = vshrl.u32 %v2090, 7
        %v2092 = vsub.s32 3, %v2091
        %v2093 = vrot.slane %v2072, %v2092
        %v2098 = vmul.f32 %v2075, %v2081
        %v2099 = vmul.f32 %v2075, %v2085
        %v2100 = vmul.f32 %v2075, %v2089
        %v2101 = vmul.f32 %v2075, %v2093
        %v2102 = vadd.f32 %v2067, %v2098
        %v2103 = vadd.f32 %v2068, %v2099
        %v2104 = vadd.f32 %v2069, %v2100
        %v2105 = vadd.f32 %v2070, %v2101
        %2110 = vrot.lane.b32.xlu0 %v2102, 118
        %v2111 = vpop.permute.xlu0 %2110
        %2112 = vrot.lane.b32.xlu0 %v2103, 118
        %v2113 = vpop.permute.xlu0 %2112
        %2114 = vrot.lane.b32.xlu0 %v2104, 118
        %v2115 = vpop.permute.xlu0 %2114
        %2116 = vrot.lane.b32.xlu0 %v2105, 118
        %v2117 = vpop.permute.xlu0 %2116
        %vm2118 = vcmask 965632
        %v2119 = vsel %vm2118, %v2111, %v2113
        %v2120 = vsel %vm2118, %v2113, %v2115
        %v2121 = vsel %vm2118, %v2115, %v2117
        %v2126 = vadd.f32 %v1963, %v2111
        %v2127 = vadd.f32 %v1964, %v2119
        %v2128 = vadd.f32 %v1965, %v2120
        %v2129 = vadd.f32 %v1966, %v2121
        %v2130 = vld [vmem:[#allocation2 + $0x4] sm:$0xff]
        %v2131 = vld [vmem:[#allocation2 + $0xc] sm:$0xf]
        %v2136 = vcombine.low %v2126, %v2127
        %v2137 = vcombine.low %v2128, %v2129
        %2138 = vrot.lane.b32.xlu0 %v2136, 5
        %v2139 = vpop.permute.xlu0 %2138
        %2140 = vrot.lane.b32.xlu0 %v2137, 5
        %v2141 = vpop.permute.xlu0 %2140
        %v2142 = vrot.slane %v2139, 4
        %v2143 = vrot.slane %v2141, 4
        %v2144 = vsel %vm1304, %v2142, %v2143
        %vm2145 = vcmask 39936
        %v2146 = vsel %vm2145, %v2139, %v2144
        %v2147 = vsel %vm2145, %v2141, %v2143
        %v2150 = vadd.f32 %v2130, %v2146
        %v2151 = vadd.f32 %v2131, %v2147
        %2152 = vst [vmem:[%s328] sm:$0xff] %v2150
        %2153 = vst [vmem:[%s328 + $0x8] sm:$0xf] %v2151
        %s2154 = sand.u32 %s183, 1
        %s2155 = scalar_lea.sflag [#allocation4], %s2154
        %s2156 = sand.u32 %s183, 1
        %s2157 = smul.addr %s2156, 12
        %s2158 = scalar_lea.vmem [#allocation3], %s2157
        // Predicated region
        $region49: #{tpu_custom_call.1} parent=39 // pred_check
          %p2159 = pneg %p193
        $region50: #{tpu_custom_call.1} parent=39 // pred_check_branch
          %2161 = sbr.rel (%p2159) target = $region52
        $region51: #{tpu_custom_call.1} parent=39 // pred_region
          %s2162 = smul.u32 3, %s24
          %s2164 = ssub.s32 192, 192
          %2165 = vsyncadd %s2155, %s2164
          %s2166 = smul.addr %s23, 3
          %s2167 = sadd.s32 %s2162, %s2166
          %s2168 = smul.addr %s2167, 64
          %s2169 = scalar_lea.hbm %s5, %s2168
          %s2171 = sshll.u32 %s2158, 4
          %s2172 = int_to_ptr.vmem [resolvable:$true] %s2171
          %2174 = dma.vmem_to_hbm [thread:$0]  %s2172, 192, %s2169, %s2155
        $region52: #{tpu_custom_call.1} parent=39 // pred_fallthru
          _
      $region40: #{tpu_custom_call.1} parent=5 // pred_fallthru
        _
      %p2175 = scmp.le.s32.totalorder 2, %s14
      // Predicated region
      $region53: #{tpu_custom_call.1} parent=5 // pred_check
        %p2176 = pneg %p2175
      $region54: #{tpu_custom_call.1} parent=5 // pred_check_branch
        %2178 = sbr.rel (%p2176) target = $region56
      $region55: #{tpu_custom_call.1} parent=5 // pred_region
        %s2179 = ssub.s32 %s14, 2
        // Predicated region
        $region57: #{tpu_custom_call.1} parent=55 // pred_check
          %p2180 = pneg %p199
        $region58: #{tpu_custom_call.1} parent=55 // pred_check_branch
          %2182 = sbr.rel (%p2180) target = $region60
        $region59: #{tpu_custom_call.1} parent=55 // pred_region
          %s2183 = sand.u32 %s184, 1
          %s2184 = scalar_lea.sflag [#allocation4], %s2183
          %s2185 = sand.u32 %s184, 1
          %s2186 = smul.addr %s2185, 12
          %s2187 = scalar_lea.vmem [#allocation3], %s2186
          %2188 = dma.done %s2184, 192
        $region60: #{tpu_custom_call.1} parent=55 // pred_fallthru
          _
      $region56: #{tpu_custom_call.1} parent=5 // pred_fallthru
        _
    $region6: #{tpu_custom_call.1} parent=1 // loop_footer
      %s18 = sadd.s32 1, %s14
    $region7: #{tpu_custom_call.1} parent=1 // loop_footer_branch
      %13 = sbr.rel target = $region3
    $region8: #{tpu_custom_call.1} parent=1 // loop_exit
      _
    %2189 = vsyncpa [#allocation4], 1
    %s2190 = scalar_lea.sflag [#allocation4], 1
    %2191 = vsyncpa %s2190, 1

</llo_original>
